<compile_context>
chip_gen: v5e
topology: v5e:2x2
jax: 0.10.0
libtpu: 0.0.40
codegen_flags: <defaults>
</compile_context>

<pallas_src>
import math
from functools import partial

import jax
import jax.numpy as jnp
from jax.experimental import pallas as pl
from jax.experimental.pallas import tpu as pltpu

VMEM = pltpu.MemorySpace.VMEM

CFG = dict(hidden=32, heads=4, layers=2, intermediate=64,
           vocab=128, max_pos=16, type_vocab=2)


# ------------------------------ kernel helpers ------------------------------

def _layernorm(x, g, b, eps=1e-12):
    mu = jnp.mean(x, axis=-1, keepdims=True)
    var = jnp.mean((x - mu) ** 2, axis=-1, keepdims=True)
    return (x - mu) * jax.lax.rsqrt(var + eps) * g + b


# ------------------------------- fused kernel -------------------------------

def _simbert_kernel(x_ref, mask_ref,
                    emb_g_ref, emb_b_ref,
                    wqkv_ref, bqkv_ref, wo_ref, bo_ref,
                    ln1g_ref, ln1b_ref,
                    w1_ref, b1_ref, w2_ref, b2_ref,
                    ln2g_ref, ln2b_ref,
                    pw_ref, pb_ref, hw_ref, hb_ref,
                    pool_ref, seq_ref,
                    *, B, S, H, nh, L):
    dh = H // nh
    N = B * S
    scale = 1.0 / math.sqrt(dh)

    # Embedding LayerNorm.
    x = _layernorm(x_ref[...], emb_g_ref[...], emb_b_ref[...])         # (N, H)

    # Full (N, N) additive mask, built ONCE and reused by every head/layer:
    # a key is attendable iff it belongs to the same batch row-block as the
    # query AND is not a padding token.
    row = jax.lax.broadcasted_iota(jnp.int32, (N, N), 0)
    col = jax.lax.broadcasted_iota(jnp.int32, (N, N), 1)
    same_batch = None
    for b in range(B):                                  # static, B = 2
        lo, hi = b * S, (b + 1) * S
        blk = (row >= lo) & (row < hi) & (col >= lo) & (col < hi)
        same_batch = blk if same_batch is None else jnp.logical_or(same_batch, blk)
    key_ok = mask_ref[...] > 0.5                                       # (1, N)
    add_mask = jnp.where(jnp.logical_and(same_batch, key_ok),
                         0.0, -1e9).astype(jnp.float32)                # (N, N)

    for l in range(L):                                  # static unroll, L = 2
        # Fused QKV projection: one (H, 3H) bf16 matmul, f32 accumulate.
        xb = x.astype(jnp.bfloat16)                     # cast once per layer
        qkv = jnp.dot(xb, wqkv_ref[l],
                      preferred_element_type=jnp.float32) + bqkv_ref[l]  # (N,3H)

        # Per-head attention over the WHOLE batch at once; contexts stay in
        # vregs and are concatenated (no VMEM scratch, no partial stores).
        ctx_heads = []
        for h in range(nh):
            c0 = h * dh
            qh = qkv[:, c0:c0 + dh].astype(jnp.bfloat16)               # (N, dh)
            kh = qkv[:, H + c0:H + c0 + dh].astype(jnp.bfloat16)       # (N, dh)
            vh = qkv[:, 2 * H + c0:2 * H + c0 + dh].astype(jnp.bfloat16)

            s = jax.lax.dot_general(
                qh, kh, (((1,), (1,)), ((), ())),
                preferred_element_type=jnp.float32) * scale            # (N, N)
            s = s + add_mask
            e = jnp.exp(s - jnp.max(s, axis=-1, keepdims=True))
            p = e * pl.reciprocal(jnp.sum(e, axis=-1, keepdims=True),
                                  approx=True)
            ctx_heads.append(jnp.dot(p.astype(jnp.bfloat16), vh,
                                     preferred_element_type=jnp.float32))
        ctx = jnp.concatenate(ctx_heads, axis=1)                       # (N, H)

        attn_out = jnp.dot(ctx.astype(jnp.bfloat16), wo_ref[l],
                           preferred_element_type=jnp.float32) + bo_ref[l]
        x = _layernorm(attn_out + x, ln1g_ref[l], ln1b_ref[l])

        # TODO(synk): HF BERT uses exact erf-GELU; tanh approximation used here.
        xb = x.astype(jnp.bfloat16)
        hmid = jax.nn.gelu(jnp.dot(xb, w1_ref[l],
                                   preferred_element_type=jnp.float32) + b1_ref[l],
                           approximate=True)
        ffn = jnp.dot(hmid.astype(jnp.bfloat16), w2_ref[l],
                      preferred_element_type=jnp.float32) + b2_ref[l]
        x = _layernorm(ffn + x, ln2g_ref[l], ln2b_ref[l])

    # Batched pooler: both [CLS] rows -> one (B, H) matmul + tanh, one store.
    cls = jnp.concatenate([x[b * S:b * S + 1, :] for b in range(B)], axis=0)
    pool_ref[...] = jnp.tanh(
        jnp.dot(cls.astype(jnp.bfloat16), pw_ref[...],
                preferred_element_type=jnp.float32) + pb_ref[...])

    # Vocab head over the whole sequence (lane-dense last dim = vocab = 128).
    seq_ref[...] = jnp.dot(x.astype(jnp.bfloat16), hw_ref[...],
                           preferred_element_type=jnp.float32) + hb_ref[...]


# ---------------------------- parameter set-up ------------------------------

def init_params(key, cfg):
    H, I, V, L = cfg["hidden"], cfg["intermediate"], cfg["vocab"], cfg["layers"]

    def nrm(k, shape, scale=0.02):
        return scale * jax.random.normal(k, shape, dtype=jnp.float32)

    keys = iter(jax.random.split(key, 64))
    p = {
        "word_emb": nrm(next(keys), (V, H)),
        "pos_emb": nrm(next(keys), (cfg["max_pos"], H)),
        "type_emb": nrm(next(keys), (cfg["type_vocab"], H)),
        "emb_ln_g": jnp.ones((1, H), jnp.float32),
        "emb_ln_b": jnp.zeros((1, H), jnp.float32),
        "pooler_w": nrm(next(keys), (H, H)).astype(jnp.bfloat16),
        "pooler_b": jnp.zeros((1, H), jnp.float32),
        "head_w": nrm(next(keys), (H, V)).astype(jnp.bfloat16),   # hidden->vocab
        "head_b": jnp.zeros((1, V), jnp.float32),
    }

    wqkv, wo, w1, w2 = [], [], [], []
    for _ in range(L):
        wq = nrm(next(keys), (H, H))
        wk = nrm(next(keys), (H, H))
        wv = nrm(next(keys), (H, H))
        wqkv.append(jnp.concatenate([wq, wk, wv], axis=1))        # (H, 3H)
        wo.append(nrm(next(keys), (H, H)))
        w1.append(nrm(next(keys), (H, I)))
        w2.append(nrm(next(keys), (I, H)))

    p["wqkv"] = jnp.stack(wqkv).astype(jnp.bfloat16)              # (L, H, 3H)
    p["bqkv"] = jnp.zeros((L, 1, 3 * H), jnp.float32)
    p["wo"] = jnp.stack(wo).astype(jnp.bfloat16)                  # (L, H, H)
    p["bo"] = jnp.zeros((L, 1, H), jnp.float32)
    p["ln1_g"] = jnp.ones((L, 1, H), jnp.float32)
    p["ln1_b"] = jnp.zeros((L, 1, H), jnp.float32)
    p["w1"] = jnp.stack(w1).astype(jnp.bfloat16)                  # (L, H, I)
    p["b1"] = jnp.zeros((L, 1, I), jnp.float32)
    p["w2"] = jnp.stack(w2).astype(jnp.bfloat16)                  # (L, I, H)
    p["b2"] = jnp.zeros((L, 1, H), jnp.float32)
    p["ln2_g"] = jnp.ones((L, 1, H), jnp.float32)
    p["ln2_b"] = jnp.zeros((L, 1, H), jnp.float32)
    return p


# ------------------------------ model forward -------------------------------

def model_forward(params, input_ids, token_type_ids, attention_mask, cfg):
    """Mirrors Model.forward: returns (out_cls, out_seq, pt_batch)."""
    B, S = input_ids.shape
    H, nh, L, V = cfg["hidden"], cfg["heads"], cfg["layers"], cfg["vocab"]

    # Embedding gather is XLA glue; everything downstream is one Pallas kernel.
    emb = (params["word_emb"][input_ids]
           + params["pos_emb"][jnp.arange(S)][None, :, :]
           + params["type_emb"][token_type_ids])
    x = emb.reshape(B * S, H).astype(jnp.float32)
    mask = attention_mask.astype(jnp.float32).reshape(1, B * S)    # (1, B*S)

    operands = (
        x, mask,
        params["emb_ln_g"], params["emb_ln_b"],
        params["wqkv"], params["bqkv"], params["wo"], params["bo"],
        params["ln1_g"], params["ln1_b"],
        params["w1"], params["b1"], params["w2"], params["b2"],
        params["ln2_g"], params["ln2_b"],
        params["pooler_w"], params["pooler_b"],
        params["head_w"], params["head_b"],
    )

    pooled, out_seq = pl.pallas_call(
        partial(_simbert_kernel, B=B, S=S, H=H, nh=nh, L=L),
        out_shape=(jax.ShapeDtypeStruct((B, H), jnp.float32),
                   jax.ShapeDtypeStruct((B * S, V), jnp.float32)),
        in_specs=[pl.BlockSpec(memory_space=VMEM)] * len(operands),
        out_specs=(pl.BlockSpec(memory_space=VMEM),
                   pl.BlockSpec(memory_space=VMEM)),
    )(*operands)

    out_cls = pooled                                               # (B, H)
    out_seq = out_seq.reshape(B, S, V)                             # (B, S, V)
    pt_batch = dict(input_ids=input_ids, token_type_ids=token_type_ids,
                    attention_mask=attention_mask)
    return out_cls, out_seq, pt_batch


# ----------------------------------- main -----------------------------------

if __name__ == "__main__":
    # TODO(synk): HF tokenizer + pretrained-checkpoint loading have no Pallas
    # equivalent; synthetic token ids stand in for tokenizer output.
    key = jax.random.PRNGKey(0)
    k_param, k_ids = jax.random.split(key)

    B, S = 2, 8
    params = init_params(k_param, CFG)

    input_ids = jax.random.randint(k_ids, (B, S), 0, CFG["vocab"], dtype=jnp.int32)
    # (text, synonym) pair: first half segment 0, second half segment 1.
    token_type_ids = jnp.concatenate(
        [jnp.zeros((B, S // 2), jnp.int32), jnp.ones((B, S // 2), jnp.int32)],
        axis=1)
    # batch 1 has two padding tokens at the end.
    attention_mask = jnp.array(
        [[1] * S, [1] * (S - 2) + [0, 0]], dtype=jnp.int32)

    fwd = jax.jit(partial(model_forward, cfg=CFG))
    out_cls, out_seq, batch = fwd(params, input_ids, token_type_ids,
                                  attention_mask)
    jax.block_until_ready((out_cls, out_seq))

    assert out_cls.shape == (B, CFG["hidden"])
    assert out_seq.shape == (B, S, CFG["vocab"])
    assert bool(jnp.all(jnp.isfinite(out_cls)))
    assert bool(jnp.all(jnp.isfinite(out_seq)))
    print("KERNEL_OK")
</pallas_src>

<mosaic_0001>
module attributes {stable_mosaic.version = 11 : i64} {
  func.func @_simbert_kernel(%arg0: memref<16x32xf32, #tpu.memory_space<vmem>>, %arg1: memref<1x16xf32, #tpu.memory_space<vmem>>, %arg2: memref<1x32xf32, #tpu.memory_space<vmem>>, %arg3: memref<1x32xf32, #tpu.memory_space<vmem>>, %arg4: memref<2x32x96xbf16, #tpu.memory_space<vmem>>, %arg5: memref<2x1x96xf32, #tpu.memory_space<vmem>>, %arg6: memref<2x32x32xbf16, #tpu.memory_space<vmem>>, %arg7: memref<2x1x32xf32, #tpu.memory_space<vmem>>, %arg8: memref<2x1x32xf32, #tpu.memory_space<vmem>>, %arg9: memref<2x1x32xf32, #tpu.memory_space<vmem>>, %arg10: memref<2x32x64xbf16, #tpu.memory_space<vmem>>, %arg11: memref<2x1x64xf32, #tpu.memory_space<vmem>>, %arg12: memref<2x64x32xbf16, #tpu.memory_space<vmem>>, %arg13: memref<2x1x32xf32, #tpu.memory_space<vmem>>, %arg14: memref<2x1x32xf32, #tpu.memory_space<vmem>>, %arg15: memref<2x1x32xf32, #tpu.memory_space<vmem>>, %arg16: memref<32x32xbf16, #tpu.memory_space<vmem>>, %arg17: memref<1x32xf32, #tpu.memory_space<vmem>>, %arg18: memref<32x128xbf16, #tpu.memory_space<vmem>>, %arg19: memref<1x128xf32, #tpu.memory_space<vmem>>, %arg20: memref<2x32xf32, #tpu.memory_space<vmem>>, %arg21: memref<16x128xf32, #tpu.memory_space<vmem>>) attributes {dimension_semantics = [], scalar_prefetch = 0 : i64, scratch_operands = 0 : i64, tpu.core_type = #tpu.core_type<tc>} {
    %c0 = arith.constant 0 : index
    %c0_0 = arith.constant 0 : index
    %0 = vector.load %arg0[%c0, %c0_0] : memref<16x32xf32, #tpu.memory_space<vmem>>, vector<16x32xf32>
    %c0_1 = arith.constant 0 : index
    %c0_2 = arith.constant 0 : index
    %1 = vector.load %arg2[%c0_1, %c0_2] : memref<1x32xf32, #tpu.memory_space<vmem>>, vector<1x32xf32>
    %c0_3 = arith.constant 0 : index
    %c0_4 = arith.constant 0 : index
    %2 = vector.load %arg3[%c0_3, %c0_4] : memref<1x32xf32, #tpu.memory_space<vmem>>, vector<1x32xf32>
    %cst = arith.constant dense<0.000000e+00> : vector<16xf32>
    %3 = vector.multi_reduction <add>, %0, %cst [1] : vector<16x32xf32> to vector<16xf32>
    %4 = vector.shape_cast %3 : vector<16xf32> to vector<16x1xf32>
    %cst_5 = arith.constant 3.200000e+01 : f32
    %5 = vector.broadcast %cst_5 : f32 to vector<16x1xf32>
    %6 = arith.divf %4, %5 : vector<16x1xf32>
    %7 = vector.broadcast %6 : vector<16x1xf32> to vector<16x32xf32>
    %8 = arith.subf %0, %7 : vector<16x32xf32>
    %9 = arith.mulf %8, %8 : vector<16x32xf32>
    %cst_6 = arith.constant dense<0.000000e+00> : vector<16xf32>
    %10 = vector.multi_reduction <add>, %9, %cst_6 [1] : vector<16x32xf32> to vector<16xf32>
    %11 = vector.shape_cast %10 : vector<16xf32> to vector<16x1xf32>
    %cst_7 = arith.constant 3.200000e+01 : f32
    %12 = vector.broadcast %cst_7 : f32 to vector<16x1xf32>
    %13 = arith.divf %11, %12 : vector<16x1xf32>
    %14 = vector.broadcast %6 : vector<16x1xf32> to vector<16x32xf32>
    %15 = arith.subf %0, %14 : vector<16x32xf32>
    %cst_8 = arith.constant 9.99999996E-13 : f32
    %16 = vector.broadcast %cst_8 : f32 to vector<16x1xf32>
    %17 = arith.addf %13, %16 : vector<16x1xf32>
    %18 = math.rsqrt %17 : vector<16x1xf32>
    %19 = vector.broadcast %18 : vector<16x1xf32> to vector<16x32xf32>
    %20 = arith.mulf %15, %19 : vector<16x32xf32>
    %21 = vector.broadcast %1 : vector<1x32xf32> to vector<16x32xf32>
    %22 = arith.mulf %20, %21 : vector<16x32xf32>
    %23 = vector.broadcast %2 : vector<1x32xf32> to vector<16x32xf32>
    %24 = arith.addf %22, %23 : vector<16x32xf32>
    %25 = tpu.iota {dimensions = array<i32: 0>} : vector<16x16xi32>
    %26 = tpu.iota {dimensions = array<i32: 1>} : vector<16x16xi32>
    %c0_i32 = arith.constant 0 : i32
    %27 = vector.broadcast %c0_i32 : i32 to vector<16x16xi32>
    %28 = arith.cmpi sge, %25, %27 : vector<16x16xi32>
    %c8_i32 = arith.constant 8 : i32
    %29 = vector.broadcast %c8_i32 : i32 to vector<16x16xi32>
    %30 = arith.cmpi slt, %25, %29 : vector<16x16xi32>
    %31 = arith.andi %28, %30 : vector<16x16xi1>
    %c0_i32_9 = arith.constant 0 : i32
    %32 = vector.broadcast %c0_i32_9 : i32 to vector<16x16xi32>
    %33 = arith.cmpi sge, %26, %32 : vector<16x16xi32>
    %34 = arith.andi %31, %33 : vector<16x16xi1>
    %c8_i32_10 = arith.constant 8 : i32
    %35 = vector.broadcast %c8_i32_10 : i32 to vector<16x16xi32>
    %36 = arith.cmpi slt, %26, %35 : vector<16x16xi32>
    %37 = arith.andi %34, %36 : vector<16x16xi1>
    %c8_i32_11 = arith.constant 8 : i32
    %38 = vector.broadcast %c8_i32_11 : i32 to vector<16x16xi32>
    %39 = arith.cmpi sge, %25, %38 : vector<16x16xi32>
    %c16_i32 = arith.constant 16 : i32
    %40 = vector.broadcast %c16_i32 : i32 to vector<16x16xi32>
    %41 = arith.cmpi slt, %25, %40 : vector<16x16xi32>
    %42 = arith.andi %39, %41 : vector<16x16xi1>
    %c8_i32_12 = arith.constant 8 : i32
    %43 = vector.broadcast %c8_i32_12 : i32 to vector<16x16xi32>
    %44 = arith.cmpi sge, %26, %43 : vector<16x16xi32>
    %45 = arith.andi %42, %44 : vector<16x16xi1>
    %c16_i32_13 = arith.constant 16 : i32
    %46 = vector.broadcast %c16_i32_13 : i32 to vector<16x16xi32>
    %47 = arith.cmpi slt, %26, %46 : vector<16x16xi32>
    %48 = arith.andi %45, %47 : vector<16x16xi1>
    %49 = arith.ori %37, %48 : vector<16x16xi1>
    %c0_14 = arith.constant 0 : index
    %c0_15 = arith.constant 0 : index
    %50 = vector.load %arg1[%c0_14, %c0_15] : memref<1x16xf32, #tpu.memory_space<vmem>>, vector<1x16xf32>
    %cst_16 = arith.constant 5.000000e-01 : f32
    %51 = vector.broadcast %cst_16 : f32 to vector<1x16xf32>
    %52 = arith.cmpf ogt, %50, %51 : vector<1x16xf32>
    %53 = vector.broadcast %52 : vector<1x16xi1> to vector<16x16xi1>
    %54 = arith.andi %49, %53 : vector<16x16xi1>
    %cst_17 = arith.constant 0.000000e+00 : f32
    %cst_18 = arith.constant -1.000000e+09 : f32
    %55 = vector.broadcast %cst_17 : f32 to vector<16x16xf32>
    %56 = vector.broadcast %cst_18 : f32 to vector<16x16xf32>
    %57 = arith.select %54, %55, %56 : vector<16x16xi1>, vector<16x16xf32>
    %58 = arith.truncf %24 : vector<16x32xf32> to vector<16x32xbf16>
    %c0_19 = arith.constant 0 : index
    %c0_20 = arith.constant 0 : index
    %c0_21 = arith.constant 0 : index
    %59 = vector.load %arg4[%c0_19, %c0_20, %c0_21] : memref<2x32x96xbf16, #tpu.memory_space<vmem>>, vector<1x32x96xbf16>
    %60 = vector.shape_cast %59 : vector<1x32x96xbf16> to vector<32x96xbf16>
    %cst_22 = arith.constant dense<0.000000e+00> : vector<16x96xf32>
    %61 = tpu.matmul %58, %60, %cst_22 {dimension_numbers = #tpu.dot_dimension_numbers<[1], [0], [0], [1], [0, 0, 1, 1], [], []>} : vector<16x32xbf16>, vector<32x96xbf16>, vector<16x96xf32> -> vector<16x96xf32>
    %c0_23 = arith.constant 0 : index
    %c0_24 = arith.constant 0 : index
    %c0_25 = arith.constant 0 : index
    %62 = vector.load %arg5[%c0_23, %c0_24, %c0_25] : memref<2x1x96xf32, #tpu.memory_space<vmem>>, vector<1x1x96xf32>
    %63 = vector.shape_cast %62 : vector<1x1x96xf32> to vector<1x96xf32>
    %64 = vector.broadcast %63 : vector<1x96xf32> to vector<16x96xf32>
    %65 = arith.addf %61, %64 : vector<16x96xf32>
    %66 = vector.extract_strided_slice %65 {offsets = [0, 0], sizes = [16, 8], strides = [1, 1]} : vector<16x96xf32> to vector<16x8xf32>
    %67 = arith.truncf %66 : vector<16x8xf32> to vector<16x8xbf16>
    %68 = vector.extract_strided_slice %65 {offsets = [0, 32], sizes = [16, 8], strides = [1, 1]} : vector<16x96xf32> to vector<16x8xf32>
    %69 = arith.truncf %68 : vector<16x8xf32> to vector<16x8xbf16>
    %70 = vector.extract_strided_slice %65 {offsets = [0, 64], sizes = [16, 8], strides = [1, 1]} : vector<16x96xf32> to vector<16x8xf32>
    %71 = arith.truncf %70 : vector<16x8xf32> to vector<16x8xbf16>
    %cst_26 = arith.constant dense<0.000000e+00> : vector<16x16xf32>
    %72 = tpu.matmul %67, %69, %cst_26 {dimension_numbers = #tpu.dot_dimension_numbers<[1], [1], [0], [0], [0, 0, 1, 0], [], []>} : vector<16x8xbf16>, vector<16x8xbf16>, vector<16x16xf32> -> vector<16x16xf32>
    %cst_27 = arith.constant 0.353553385 : f32
    %73 = vector.broadcast %cst_27 : f32 to vector<16x16xf32>
    %74 = arith.mulf %72, %73 : vector<16x16xf32>
    %75 = arith.addf %74, %57 : vector<16x16xf32>
    %cst_28 = arith.constant dense<0xFF800000> : vector<16xf32>
    %76 = vector.multi_reduction <maximumf>, %75, %cst_28 [1] : vector<16x16xf32> to vector<16xf32>
    %77 = vector.shape_cast %76 : vector<16xf32> to vector<16x1xf32>
    %78 = vector.broadcast %77 : vector<16x1xf32> to vector<16x16xf32>
    %79 = arith.subf %75, %78 : vector<16x16xf32>
    %80 = math.exp %79 : vector<16x16xf32>
    %cst_29 = arith.constant dense<0.000000e+00> : vector<16xf32>
    %81 = vector.multi_reduction <add>, %80, %cst_29 [1] : vector<16x16xf32> to vector<16xf32>
    %82 = vector.shape_cast %81 : vector<16xf32> to vector<16x1xf32>
    %83 = tpu.reciprocal %82 {approx = true} : vector<16x1xf32> -> vector<16x1xf32>
    %84 = vector.broadcast %83 : vector<16x1xf32> to vector<16x16xf32>
    %85 = arith.mulf %80, %84 : vector<16x16xf32>
    %86 = arith.truncf %85 : vector<16x16xf32> to vector<16x16xbf16>
    %cst_30 = arith.constant dense<0.000000e+00> : vector<16x8xf32>
    %87 = tpu.matmul %86, %71, %cst_30 {dimension_numbers = #tpu.dot_dimension_numbers<[1], [0], [0], [1], [0, 0, 1, 1], [], []>} : vector<16x16xbf16>, vector<16x8xbf16>, vector<16x8xf32> -> vector<16x8xf32>
    %88 = vector.extract_strided_slice %65 {offsets = [0, 8], sizes = [16, 8], strides = [1, 1]} : vector<16x96xf32> to vector<16x8xf32>
    %89 = arith.truncf %88 : vector<16x8xf32> to vector<16x8xbf16>
    %90 = vector.extract_strided_slice %65 {offsets = [0, 40], sizes = [16, 8], strides = [1, 1]} : vector<16x96xf32> to vector<16x8xf32>
    %91 = arith.truncf %90 : vector<16x8xf32> to vector<16x8xbf16>
    %92 = vector.extract_strided_slice %65 {offsets = [0, 72], sizes = [16, 8], strides = [1, 1]} : vector<16x96xf32> to vector<16x8xf32>
    %93 = arith.truncf %92 : vector<16x8xf32> to vector<16x8xbf16>
    %cst_31 = arith.constant dense<0.000000e+00> : vector<16x16xf32>
    %94 = tpu.matmul %89, %91, %cst_31 {dimension_numbers = #tpu.dot_dimension_numbers<[1], [1], [0], [0], [0, 0, 1, 0], [], []>} : vector<16x8xbf16>, vector<16x8xbf16>, vector<16x16xf32> -> vector<16x16xf32>
    %cst_32 = arith.constant 0.353553385 : f32
    %95 = vector.broadcast %cst_32 : f32 to vector<16x16xf32>
    %96 = arith.mulf %94, %95 : vector<16x16xf32>
    %97 = arith.addf %96, %57 : vector<16x16xf32>
    %cst_33 = arith.constant dense<0xFF800000> : vector<16xf32>
    %98 = vector.multi_reduction <maximumf>, %97, %cst_33 [1] : vector<16x16xf32> to vector<16xf32>
    %99 = vector.shape_cast %98 : vector<16xf32> to vector<16x1xf32>
    %100 = vector.broadcast %99 : vector<16x1xf32> to vector<16x16xf32>
    %101 = arith.subf %97, %100 : vector<16x16xf32>
    %102 = math.exp %101 : vector<16x16xf32>
    %cst_34 = arith.constant dense<0.000000e+00> : vector<16xf32>
    %103 = vector.multi_reduction <add>, %102, %cst_34 [1] : vector<16x16xf32> to vector<16xf32>
    %104 = vector.shape_cast %103 : vector<16xf32> to vector<16x1xf32>
    %105 = tpu.reciprocal %104 {approx = true} : vector<16x1xf32> -> vector<16x1xf32>
    %106 = vector.broadcast %105 : vector<16x1xf32> to vector<16x16xf32>
    %107 = arith.mulf %102, %106 : vector<16x16xf32>
    %108 = arith.truncf %107 : vector<16x16xf32> to vector<16x16xbf16>
    %cst_35 = arith.constant dense<0.000000e+00> : vector<16x8xf32>
    %109 = tpu.matmul %108, %93, %cst_35 {dimension_numbers = #tpu.dot_dimension_numbers<[1], [0], [0], [1], [0, 0, 1, 1], [], []>} : vector<16x16xbf16>, vector<16x8xbf16>, vector<16x8xf32> -> vector<16x8xf32>
    %110 = vector.extract_strided_slice %65 {offsets = [0, 16], sizes = [16, 8], strides = [1, 1]} : vector<16x96xf32> to vector<16x8xf32>
    %111 = arith.truncf %110 : vector<16x8xf32> to vector<16x8xbf16>
    %112 = vector.extract_strided_slice %65 {offsets = [0, 48], sizes = [16, 8], strides = [1, 1]} : vector<16x96xf32> to vector<16x8xf32>
    %113 = arith.truncf %112 : vector<16x8xf32> to vector<16x8xbf16>
    %114 = vector.extract_strided_slice %65 {offsets = [0, 80], sizes = [16, 8], strides = [1, 1]} : vector<16x96xf32> to vector<16x8xf32>
    %115 = arith.truncf %114 : vector<16x8xf32> to vector<16x8xbf16>
    %cst_36 = arith.constant dense<0.000000e+00> : vector<16x16xf32>
    %116 = tpu.matmul %111, %113, %cst_36 {dimension_numbers = #tpu.dot_dimension_numbers<[1], [1], [0], [0], [0, 0, 1, 0], [], []>} : vector<16x8xbf16>, vector<16x8xbf16>, vector<16x16xf32> -> vector<16x16xf32>
    %cst_37 = arith.constant 0.353553385 : f32
    %117 = vector.broadcast %cst_37 : f32 to vector<16x16xf32>
    %118 = arith.mulf %116, %117 : vector<16x16xf32>
    %119 = arith.addf %118, %57 : vector<16x16xf32>
    %cst_38 = arith.constant dense<0xFF800000> : vector<16xf32>
    %120 = vector.multi_reduction <maximumf>, %119, %cst_38 [1] : vector<16x16xf32> to vector<16xf32>
    %121 = vector.shape_cast %120 : vector<16xf32> to vector<16x1xf32>
    %122 = vector.broadcast %121 : vector<16x1xf32> to vector<16x16xf32>
    %123 = arith.subf %119, %122 : vector<16x16xf32>
    %124 = math.exp %123 : vector<16x16xf32>
    %cst_39 = arith.constant dense<0.000000e+00> : vector<16xf32>
    %125 = vector.multi_reduction <add>, %124, %cst_39 [1] : vector<16x16xf32> to vector<16xf32>
    %126 = vector.shape_cast %125 : vector<16xf32> to vector<16x1xf32>
    %127 = tpu.reciprocal %126 {approx = true} : vector<16x1xf32> -> vector<16x1xf32>
    %128 = vector.broadcast %127 : vector<16x1xf32> to vector<16x16xf32>
    %129 = arith.mulf %124, %128 : vector<16x16xf32>
    %130 = arith.truncf %129 : vector<16x16xf32> to vector<16x16xbf16>
    %cst_40 = arith.constant dense<0.000000e+00> : vector<16x8xf32>
    %131 = tpu.matmul %130, %115, %cst_40 {dimension_numbers = #tpu.dot_dimension_numbers<[1], [0], [0], [1], [0, 0, 1, 1], [], []>} : vector<16x16xbf16>, vector<16x8xbf16>, vector<16x8xf32> -> vector<16x8xf32>
    %132 = vector.extract_strided_slice %65 {offsets = [0, 24], sizes = [16, 8], strides = [1, 1]} : vector<16x96xf32> to vector<16x8xf32>
    %133 = arith.truncf %132 : vector<16x8xf32> to vector<16x8xbf16>
    %134 = vector.extract_strided_slice %65 {offsets = [0, 56], sizes = [16, 8], strides = [1, 1]} : vector<16x96xf32> to vector<16x8xf32>
    %135 = arith.truncf %134 : vector<16x8xf32> to vector<16x8xbf16>
    %136 = vector.extract_strided_slice %65 {offsets = [0, 88], sizes = [16, 8], strides = [1, 1]} : vector<16x96xf32> to vector<16x8xf32>
    %137 = arith.truncf %136 : vector<16x8xf32> to vector<16x8xbf16>
    %cst_41 = arith.constant dense<0.000000e+00> : vector<16x16xf32>
    %138 = tpu.matmul %133, %135, %cst_41 {dimension_numbers = #tpu.dot_dimension_numbers<[1], [1], [0], [0], [0, 0, 1, 0], [], []>} : vector<16x8xbf16>, vector<16x8xbf16>, vector<16x16xf32> -> vector<16x16xf32>
    %cst_42 = arith.constant 0.353553385 : f32
    %139 = vector.broadcast %cst_42 : f32 to vector<16x16xf32>
    %140 = arith.mulf %138, %139 : vector<16x16xf32>
    %141 = arith.addf %140, %57 : vector<16x16xf32>
    %cst_43 = arith.constant dense<0xFF800000> : vector<16xf32>
    %142 = vector.multi_reduction <maximumf>, %141, %cst_43 [1] : vector<16x16xf32> to vector<16xf32>
    %143 = vector.shape_cast %142 : vector<16xf32> to vector<16x1xf32>
    %144 = vector.broadcast %143 : vector<16x1xf32> to vector<16x16xf32>
    %145 = arith.subf %141, %144 : vector<16x16xf32>
    %146 = math.exp %145 : vector<16x16xf32>
    %cst_44 = arith.constant dense<0.000000e+00> : vector<16xf32>
    %147 = vector.multi_reduction <add>, %146, %cst_44 [1] : vector<16x16xf32> to vector<16xf32>
    %148 = vector.shape_cast %147 : vector<16xf32> to vector<16x1xf32>
    %149 = tpu.reciprocal %148 {approx = true} : vector<16x1xf32> -> vector<16x1xf32>
    %150 = vector.broadcast %149 : vector<16x1xf32> to vector<16x16xf32>
    %151 = arith.mulf %146, %150 : vector<16x16xf32>
    %152 = arith.truncf %151 : vector<16x16xf32> to vector<16x16xbf16>
    %cst_45 = arith.constant dense<0.000000e+00> : vector<16x8xf32>
    %153 = tpu.matmul %152, %137, %cst_45 {dimension_numbers = #tpu.dot_dimension_numbers<[1], [0], [0], [1], [0, 0, 1, 1], [], []>} : vector<16x16xbf16>, vector<16x8xbf16>, vector<16x8xf32> -> vector<16x8xf32>
    %154 = tpu.concatenate %87, %109, %131, %153 in 1 : vector<16x8xf32>, vector<16x8xf32>, vector<16x8xf32>, vector<16x8xf32> -> vector<16x32xf32>
    %155 = arith.truncf %154 : vector<16x32xf32> to vector<16x32xbf16>
    %c0_46 = arith.constant 0 : index
    %c0_47 = arith.constant 0 : index
    %c0_48 = arith.constant 0 : index
    %156 = vector.load %arg6[%c0_46, %c0_47, %c0_48] : memref<2x32x32xbf16, #tpu.memory_space<vmem>>, vector<1x32x32xbf16>
    %157 = vector.shape_cast %156 : vector<1x32x32xbf16> to vector<32x32xbf16>
    %cst_49 = arith.constant dense<0.000000e+00> : vector<16x32xf32>
    %158 = tpu.matmul %155, %157, %cst_49 {dimension_numbers = #tpu.dot_dimension_numbers<[1], [0], [0], [1], [0, 0, 1, 1], [], []>} : vector<16x32xbf16>, vector<32x32xbf16>, vector<16x32xf32> -> vector<16x32xf32>
    %c0_50 = arith.constant 0 : index
    %c0_51 = arith.constant 0 : index
    %c0_52 = arith.constant 0 : index
    %159 = vector.load %arg7[%c0_50, %c0_51, %c0_52] : memref<2x1x32xf32, #tpu.memory_space<vmem>>, vector<1x1x32xf32>
    %160 = vector.shape_cast %159 : vector<1x1x32xf32> to vector<1x32xf32>
    %161 = vector.broadcast %160 : vector<1x32xf32> to vector<16x32xf32>
    %162 = arith.addf %158, %161 : vector<16x32xf32>
    %163 = arith.addf %162, %24 : vector<16x32xf32>
    %c0_53 = arith.constant 0 : index
    %c0_54 = arith.constant 0 : index
    %c0_55 = arith.constant 0 : index
    %164 = vector.load %arg8[%c0_53, %c0_54, %c0_55] : memref<2x1x32xf32, #tpu.memory_space<vmem>>, vector<1x1x32xf32>
    %165 = vector.shape_cast %164 : vector<1x1x32xf32> to vector<1x32xf32>
    %c0_56 = arith.constant 0 : index
    %c0_57 = arith.constant 0 : index
    %c0_58 = arith.constant 0 : index
    %166 = vector.load %arg9[%c0_56, %c0_57, %c0_58] : memref<2x1x32xf32, #tpu.memory_space<vmem>>, vector<1x1x32xf32>
    %167 = vector.shape_cast %166 : vector<1x1x32xf32> to vector<1x32xf32>
    %cst_59 = arith.constant dense<0.000000e+00> : vector<16xf32>
    %168 = vector.multi_reduction <add>, %163, %cst_59 [1] : vector<16x32xf32> to vector<16xf32>
    %169 = vector.shape_cast %168 : vector<16xf32> to vector<16x1xf32>
    %cst_60 = arith.constant 3.200000e+01 : f32
    %170 = vector.broadcast %cst_60 : f32 to vector<16x1xf32>
    %171 = arith.divf %169, %170 : vector<16x1xf32>
    %172 = vector.broadcast %171 : vector<16x1xf32> to vector<16x32xf32>
    %173 = arith.subf %163, %172 : vector<16x32xf32>
    %174 = arith.mulf %173, %173 : vector<16x32xf32>
    %cst_61 = arith.constant dense<0.000000e+00> : vector<16xf32>
    %175 = vector.multi_reduction <add>, %174, %cst_61 [1] : vector<16x32xf32> to vector<16xf32>
    %176 = vector.shape_cast %175 : vector<16xf32> to vector<16x1xf32>
    %cst_62 = arith.constant 3.200000e+01 : f32
    %177 = vector.broadcast %cst_62 : f32 to vector<16x1xf32>
    %178 = arith.divf %176, %177 : vector<16x1xf32>
    %179 = vector.broadcast %171 : vector<16x1xf32> to vector<16x32xf32>
    %180 = arith.subf %163, %179 : vector<16x32xf32>
    %cst_63 = arith.constant 9.99999996E-13 : f32
    %181 = vector.broadcast %cst_63 : f32 to vector<16x1xf32>
    %182 = arith.addf %178, %181 : vector<16x1xf32>
    %183 = math.rsqrt %182 : vector<16x1xf32>
    %184 = vector.broadcast %183 : vector<16x1xf32> to vector<16x32xf32>
    %185 = arith.mulf %180, %184 : vector<16x32xf32>
    %186 = vector.broadcast %165 : vector<1x32xf32> to vector<16x32xf32>
    %187 = arith.mulf %185, %186 : vector<16x32xf32>
    %188 = vector.broadcast %167 : vector<1x32xf32> to vector<16x32xf32>
    %189 = arith.addf %187, %188 : vector<16x32xf32>
    %190 = arith.truncf %189 : vector<16x32xf32> to vector<16x32xbf16>
    %c0_64 = arith.constant 0 : index
    %c0_65 = arith.constant 0 : index
    %c0_66 = arith.constant 0 : index
    %191 = vector.load %arg10[%c0_64, %c0_65, %c0_66] : memref<2x32x64xbf16, #tpu.memory_space<vmem>>, vector<1x32x64xbf16>
    %192 = vector.shape_cast %191 : vector<1x32x64xbf16> to vector<32x64xbf16>
    %cst_67 = arith.constant dense<0.000000e+00> : vector<16x64xf32>
    %193 = tpu.matmul %190, %192, %cst_67 {dimension_numbers = #tpu.dot_dimension_numbers<[1], [0], [0], [1], [0, 0, 1, 1], [], []>} : vector<16x32xbf16>, vector<32x64xbf16>, vector<16x64xf32> -> vector<16x64xf32>
    %c0_68 = arith.constant 0 : index
    %c0_69 = arith.constant 0 : index
    %c0_70 = arith.constant 0 : index
    %194 = vector.load %arg11[%c0_68, %c0_69, %c0_70] : memref<2x1x64xf32, #tpu.memory_space<vmem>>, vector<1x1x64xf32>
    %195 = vector.shape_cast %194 : vector<1x1x64xf32> to vector<1x64xf32>
    %196 = vector.broadcast %195 : vector<1x64xf32> to vector<16x64xf32>
    %197 = arith.addf %193, %196 : vector<16x64xf32>
    %198 = arith.mulf %197, %197 : vector<16x64xf32>
    %199 = arith.mulf %197, %198 : vector<16x64xf32>
    %cst_71 = arith.constant 4.471500e-02 : f32
    %200 = vector.broadcast %cst_71 : f32 to vector<16x64xf32>
    %201 = arith.mulf %200, %199 : vector<16x64xf32>
    %202 = arith.addf %197, %201 : vector<16x64xf32>
    %cst_72 = arith.constant 0.797884583 : f32
    %203 = vector.broadcast %cst_72 : f32 to vector<16x64xf32>
    %204 = arith.mulf %203, %202 : vector<16x64xf32>
    %205 = math.tanh %204 : vector<16x64xf32>
    %cst_73 = arith.constant 1.000000e+00 : f32
    %206 = vector.broadcast %cst_73 : f32 to vector<16x64xf32>
    %207 = arith.addf %206, %205 : vector<16x64xf32>
    %cst_74 = arith.constant 5.000000e-01 : f32
    %208 = vector.broadcast %cst_74 : f32 to vector<16x64xf32>
    %209 = arith.mulf %208, %207 : vector<16x64xf32>
    %210 = arith.mulf %197, %209 : vector<16x64xf32>
    %211 = arith.truncf %210 : vector<16x64xf32> to vector<16x64xbf16>
    %c0_75 = arith.constant 0 : index
    %c0_76 = arith.constant 0 : index
    %c0_77 = arith.constant 0 : index
    %212 = vector.load %arg12[%c0_75, %c0_76, %c0_77] : memref<2x64x32xbf16, #tpu.memory_space<vmem>>, vector<1x64x32xbf16>
    %213 = vector.shape_cast %212 : vector<1x64x32xbf16> to vector<64x32xbf16>
    %cst_78 = arith.constant dense<0.000000e+00> : vector<16x32xf32>
    %214 = tpu.matmul %211, %213, %cst_78 {dimension_numbers = #tpu.dot_dimension_numbers<[1], [0], [0], [1], [0, 0, 1, 1], [], []>} : vector<16x64xbf16>, vector<64x32xbf16>, vector<16x32xf32> -> vector<16x32xf32>
    %c0_79 = arith.constant 0 : index
    %c0_80 = arith.constant 0 : index
    %c0_81 = arith.constant 0 : index
    %215 = vector.load %arg13[%c0_79, %c0_80, %c0_81] : memref<2x1x32xf32, #tpu.memory_space<vmem>>, vector<1x1x32xf32>
    %216 = vector.shape_cast %215 : vector<1x1x32xf32> to vector<1x32xf32>
    %217 = vector.broadcast %216 : vector<1x32xf32> to vector<16x32xf32>
    %218 = arith.addf %214, %217 : vector<16x32xf32>
    %219 = arith.addf %218, %189 : vector<16x32xf32>
    %c0_82 = arith.constant 0 : index
    %c0_83 = arith.constant 0 : index
    %c0_84 = arith.constant 0 : index
    %220 = vector.load %arg14[%c0_82, %c0_83, %c0_84] : memref<2x1x32xf32, #tpu.memory_space<vmem>>, vector<1x1x32xf32>
    %221 = vector.shape_cast %220 : vector<1x1x32xf32> to vector<1x32xf32>
    %c0_85 = arith.constant 0 : index
    %c0_86 = arith.constant 0 : index
    %c0_87 = arith.constant 0 : index
    %222 = vector.load %arg15[%c0_85, %c0_86, %c0_87] : memref<2x1x32xf32, #tpu.memory_space<vmem>>, vector<1x1x32xf32>
    %223 = vector.shape_cast %222 : vector<1x1x32xf32> to vector<1x32xf32>
    %cst_88 = arith.constant dense<0.000000e+00> : vector<16xf32>
    %224 = vector.multi_reduction <add>, %219, %cst_88 [1] : vector<16x32xf32> to vector<16xf32>
    %225 = vector.shape_cast %224 : vector<16xf32> to vector<16x1xf32>
    %cst_89 = arith.constant 3.200000e+01 : f32
    %226 = vector.broadcast %cst_89 : f32 to vector<16x1xf32>
    %227 = arith.divf %225, %226 : vector<16x1xf32>
    %228 = vector.broadcast %227 : vector<16x1xf32> to vector<16x32xf32>
    %229 = arith.subf %219, %228 : vector<16x32xf32>
    %230 = arith.mulf %229, %229 : vector<16x32xf32>
    %cst_90 = arith.constant dense<0.000000e+00> : vector<16xf32>
    %231 = vector.multi_reduction <add>, %230, %cst_90 [1] : vector<16x32xf32> to vector<16xf32>
    %232 = vector.shape_cast %231 : vector<16xf32> to vector<16x1xf32>
    %cst_91 = arith.constant 3.200000e+01 : f32
    %233 = vector.broadcast %cst_91 : f32 to vector<16x1xf32>
    %234 = arith.divf %232, %233 : vector<16x1xf32>
    %235 = vector.broadcast %227 : vector<16x1xf32> to vector<16x32xf32>
    %236 = arith.subf %219, %235 : vector<16x32xf32>
    %cst_92 = arith.constant 9.99999996E-13 : f32
    %237 = vector.broadcast %cst_92 : f32 to vector<16x1xf32>
    %238 = arith.addf %234, %237 : vector<16x1xf32>
    %239 = math.rsqrt %238 : vector<16x1xf32>
    %240 = vector.broadcast %239 : vector<16x1xf32> to vector<16x32xf32>
    %241 = arith.mulf %236, %240 : vector<16x32xf32>
    %242 = vector.broadcast %221 : vector<1x32xf32> to vector<16x32xf32>
    %243 = arith.mulf %241, %242 : vector<16x32xf32>
    %244 = vector.broadcast %223 : vector<1x32xf32> to vector<16x32xf32>
    %245 = arith.addf %243, %244 : vector<16x32xf32>
    %246 = arith.truncf %245 : vector<16x32xf32> to vector<16x32xbf16>
    %c1 = arith.constant 1 : index
    %c0_93 = arith.constant 0 : index
    %c0_94 = arith.constant 0 : index
    %247 = vector.load %arg4[%c1, %c0_93, %c0_94] : memref<2x32x96xbf16, #tpu.memory_space<vmem>>, vector<1x32x96xbf16>
    %248 = vector.shape_cast %247 : vector<1x32x96xbf16> to vector<32x96xbf16>
    %cst_95 = arith.constant dense<0.000000e+00> : vector<16x96xf32>
    %249 = tpu.matmul %246, %248, %cst_95 {dimension_numbers = #tpu.dot_dimension_numbers<[1], [0], [0], [1], [0, 0, 1, 1], [], []>} : vector<16x32xbf16>, vector<32x96xbf16>, vector<16x96xf32> -> vector<16x96xf32>
    %c1_96 = arith.constant 1 : index
    %c0_97 = arith.constant 0 : index
    %c0_98 = arith.constant 0 : index
    %250 = vector.load %arg5[%c1_96, %c0_97, %c0_98] : memref<2x1x96xf32, #tpu.memory_space<vmem>>, vector<1x1x96xf32>
    %251 = vector.shape_cast %250 : vector<1x1x96xf32> to vector<1x96xf32>
    %252 = vector.broadcast %251 : vector<1x96xf32> to vector<16x96xf32>
    %253 = arith.addf %249, %252 : vector<16x96xf32>
    %254 = vector.extract_strided_slice %253 {offsets = [0, 0], sizes = [16, 8], strides = [1, 1]} : vector<16x96xf32> to vector<16x8xf32>
    %255 = arith.truncf %254 : vector<16x8xf32> to vector<16x8xbf16>
    %256 = vector.extract_strided_slice %253 {offsets = [0, 32], sizes = [16, 8], strides = [1, 1]} : vector<16x96xf32> to vector<16x8xf32>
    %257 = arith.truncf %256 : vector<16x8xf32> to vector<16x8xbf16>
    %258 = vector.extract_strided_slice %253 {offsets = [0, 64], sizes = [16, 8], strides = [1, 1]} : vector<16x96xf32> to vector<16x8xf32>
    %259 = arith.truncf %258 : vector<16x8xf32> to vector<16x8xbf16>
    %cst_99 = arith.constant dense<0.000000e+00> : vector<16x16xf32>
    %260 = tpu.matmul %255, %257, %cst_99 {dimension_numbers = #tpu.dot_dimension_numbers<[1], [1], [0], [0], [0, 0, 1, 0], [], []>} : vector<16x8xbf16>, vector<16x8xbf16>, vector<16x16xf32> -> vector<16x16xf32>
    %cst_100 = arith.constant 0.353553385 : f32
    %261 = vector.broadcast %cst_100 : f32 to vector<16x16xf32>
    %262 = arith.mulf %260, %261 : vector<16x16xf32>
    %263 = arith.addf %262, %57 : vector<16x16xf32>
    %cst_101 = arith.constant dense<0xFF800000> : vector<16xf32>
    %264 = vector.multi_reduction <maximumf>, %263, %cst_101 [1] : vector<16x16xf32> to vector<16xf32>
    %265 = vector.shape_cast %264 : vector<16xf32> to vector<16x1xf32>
    %266 = vector.broadcast %265 : vector<16x1xf32> to vector<16x16xf32>
    %267 = arith.subf %263, %266 : vector<16x16xf32>
    %268 = math.exp %267 : vector<16x16xf32>
    %cst_102 = arith.constant dense<0.000000e+00> : vector<16xf32>
    %269 = vector.multi_reduction <add>, %268, %cst_102 [1] : vector<16x16xf32> to vector<16xf32>
    %270 = vector.shape_cast %269 : vector<16xf32> to vector<16x1xf32>
    %271 = tpu.reciprocal %270 {approx = true} : vector<16x1xf32> -> vector<16x1xf32>
    %272 = vector.broadcast %271 : vector<16x1xf32> to vector<16x16xf32>
    %273 = arith.mulf %268, %272 : vector<16x16xf32>
    %274 = arith.truncf %273 : vector<16x16xf32> to vector<16x16xbf16>
    %cst_103 = arith.constant dense<0.000000e+00> : vector<16x8xf32>
    %275 = tpu.matmul %274, %259, %cst_103 {dimension_numbers = #tpu.dot_dimension_numbers<[1], [0], [0], [1], [0, 0, 1, 1], [], []>} : vector<16x16xbf16>, vector<16x8xbf16>, vector<16x8xf32> -> vector<16x8xf32>
    %276 = vector.extract_strided_slice %253 {offsets = [0, 8], sizes = [16, 8], strides = [1, 1]} : vector<16x96xf32> to vector<16x8xf32>
    %277 = arith.truncf %276 : vector<16x8xf32> to vector<16x8xbf16>
    %278 = vector.extract_strided_slice %253 {offsets = [0, 40], sizes = [16, 8], strides = [1, 1]} : vector<16x96xf32> to vector<16x8xf32>
    %279 = arith.truncf %278 : vector<16x8xf32> to vector<16x8xbf16>
    %280 = vector.extract_strided_slice %253 {offsets = [0, 72], sizes = [16, 8], strides = [1, 1]} : vector<16x96xf32> to vector<16x8xf32>
    %281 = arith.truncf %280 : vector<16x8xf32> to vector<16x8xbf16>
    %cst_104 = arith.constant dense<0.000000e+00> : vector<16x16xf32>
    %282 = tpu.matmul %277, %279, %cst_104 {dimension_numbers = #tpu.dot_dimension_numbers<[1], [1], [0], [0], [0, 0, 1, 0], [], []>} : vector<16x8xbf16>, vector<16x8xbf16>, vector<16x16xf32> -> vector<16x16xf32>
    %cst_105 = arith.constant 0.353553385 : f32
    %283 = vector.broadcast %cst_105 : f32 to vector<16x16xf32>
    %284 = arith.mulf %282, %283 : vector<16x16xf32>
    %285 = arith.addf %284, %57 : vector<16x16xf32>
    %cst_106 = arith.constant dense<0xFF800000> : vector<16xf32>
    %286 = vector.multi_reduction <maximumf>, %285, %cst_106 [1] : vector<16x16xf32> to vector<16xf32>
    %287 = vector.shape_cast %286 : vector<16xf32> to vector<16x1xf32>
    %288 = vector.broadcast %287 : vector<16x1xf32> to vector<16x16xf32>
    %289 = arith.subf %285, %288 : vector<16x16xf32>
    %290 = math.exp %289 : vector<16x16xf32>
    %cst_107 = arith.constant dense<0.000000e+00> : vector<16xf32>
    %291 = vector.multi_reduction <add>, %290, %cst_107 [1] : vector<16x16xf32> to vector<16xf32>
    %292 = vector.shape_cast %291 : vector<16xf32> to vector<16x1xf32>
    %293 = tpu.reciprocal %292 {approx = true} : vector<16x1xf32> -> vector<16x1xf32>
    %294 = vector.broadcast %293 : vector<16x1xf32> to vector<16x16xf32>
    %295 = arith.mulf %290, %294 : vector<16x16xf32>
    %296 = arith.truncf %295 : vector<16x16xf32> to vector<16x16xbf16>
    %cst_108 = arith.constant dense<0.000000e+00> : vector<16x8xf32>
    %297 = tpu.matmul %296, %281, %cst_108 {dimension_numbers = #tpu.dot_dimension_numbers<[1], [0], [0], [1], [0, 0, 1, 1], [], []>} : vector<16x16xbf16>, vector<16x8xbf16>, vector<16x8xf32> -> vector<16x8xf32>
    %298 = vector.extract_strided_slice %253 {offsets = [0, 16], sizes = [16, 8], strides = [1, 1]} : vector<16x96xf32> to vector<16x8xf32>
    %299 = arith.truncf %298 : vector<16x8xf32> to vector<16x8xbf16>
    %300 = vector.extract_strided_slice %253 {offsets = [0, 48], sizes = [16, 8], strides = [1, 1]} : vector<16x96xf32> to vector<16x8xf32>
    %301 = arith.truncf %300 : vector<16x8xf32> to vector<16x8xbf16>
    %302 = vector.extract_strided_slice %253 {offsets = [0, 80], sizes = [16, 8], strides = [1, 1]} : vector<16x96xf32> to vector<16x8xf32>
    %303 = arith.truncf %302 : vector<16x8xf32> to vector<16x8xbf16>
    %cst_109 = arith.constant dense<0.000000e+00> : vector<16x16xf32>
    %304 = tpu.matmul %299, %301, %cst_109 {dimension_numbers = #tpu.dot_dimension_numbers<[1], [1], [0], [0], [0, 0, 1, 0], [], []>} : vector<16x8xbf16>, vector<16x8xbf16>, vector<16x16xf32> -> vector<16x16xf32>
    %cst_110 = arith.constant 0.353553385 : f32
    %305 = vector.broadcast %cst_110 : f32 to vector<16x16xf32>
    %306 = arith.mulf %304, %305 : vector<16x16xf32>
    %307 = arith.addf %306, %57 : vector<16x16xf32>
    %cst_111 = arith.constant dense<0xFF800000> : vector<16xf32>
    %308 = vector.multi_reduction <maximumf>, %307, %cst_111 [1] : vector<16x16xf32> to vector<16xf32>
    %309 = vector.shape_cast %308 : vector<16xf32> to vector<16x1xf32>
    %310 = vector.broadcast %309 : vector<16x1xf32> to vector<16x16xf32>
    %311 = arith.subf %307, %310 : vector<16x16xf32>
    %312 = math.exp %311 : vector<16x16xf32>
    %cst_112 = arith.constant dense<0.000000e+00> : vector<16xf32>
    %313 = vector.multi_reduction <add>, %312, %cst_112 [1] : vector<16x16xf32> to vector<16xf32>
    %314 = vector.shape_cast %313 : vector<16xf32> to vector<16x1xf32>
    %315 = tpu.reciprocal %314 {approx = true} : vector<16x1xf32> -> vector<16x1xf32>
    %316 = vector.broadcast %315 : vector<16x1xf32> to vector<16x16xf32>
    %317 = arith.mulf %312, %316 : vector<16x16xf32>
    %318 = arith.truncf %317 : vector<16x16xf32> to vector<16x16xbf16>
    %cst_113 = arith.constant dense<0.000000e+00> : vector<16x8xf32>
    %319 = tpu.matmul %318, %303, %cst_113 {dimension_numbers = #tpu.dot_dimension_numbers<[1], [0], [0], [1], [0, 0, 1, 1], [], []>} : vector<16x16xbf16>, vector<16x8xbf16>, vector<16x8xf32> -> vector<16x8xf32>
    %320 = vector.extract_strided_slice %253 {offsets = [0, 24], sizes = [16, 8], strides = [1, 1]} : vector<16x96xf32> to vector<16x8xf32>
    %321 = arith.truncf %320 : vector<16x8xf32> to vector<16x8xbf16>
    %322 = vector.extract_strided_slice %253 {offsets = [0, 56], sizes = [16, 8], strides = [1, 1]} : vector<16x96xf32> to vector<16x8xf32>
    %323 = arith.truncf %322 : vector<16x8xf32> to vector<16x8xbf16>
    %324 = vector.extract_strided_slice %253 {offsets = [0, 88], sizes = [16, 8], strides = [1, 1]} : vector<16x96xf32> to vector<16x8xf32>
    %325 = arith.truncf %324 : vector<16x8xf32> to vector<16x8xbf16>
    %cst_114 = arith.constant dense<0.000000e+00> : vector<16x16xf32>
    %326 = tpu.matmul %321, %323, %cst_114 {dimension_numbers = #tpu.dot_dimension_numbers<[1], [1], [0], [0], [0, 0, 1, 0], [], []>} : vector<16x8xbf16>, vector<16x8xbf16>, vector<16x16xf32> -> vector<16x16xf32>
    %cst_115 = arith.constant 0.353553385 : f32
    %327 = vector.broadcast %cst_115 : f32 to vector<16x16xf32>
    %328 = arith.mulf %326, %327 : vector<16x16xf32>
    %329 = arith.addf %328, %57 : vector<16x16xf32>
    %cst_116 = arith.constant dense<0xFF800000> : vector<16xf32>
    %330 = vector.multi_reduction <maximumf>, %329, %cst_116 [1] : vector<16x16xf32> to vector<16xf32>
    %331 = vector.shape_cast %330 : vector<16xf32> to vector<16x1xf32>
    %332 = vector.broadcast %331 : vector<16x1xf32> to vector<16x16xf32>
    %333 = arith.subf %329, %332 : vector<16x16xf32>
    %334 = math.exp %333 : vector<16x16xf32>
    %cst_117 = arith.constant dense<0.000000e+00> : vector<16xf32>
    %335 = vector.multi_reduction <add>, %334, %cst_117 [1] : vector<16x16xf32> to vector<16xf32>
    %336 = vector.shape_cast %335 : vector<16xf32> to vector<16x1xf32>
    %337 = tpu.reciprocal %336 {approx = true} : vector<16x1xf32> -> vector<16x1xf32>
    %338 = vector.broadcast %337 : vector<16x1xf32> to vector<16x16xf32>
    %339 = arith.mulf %334, %338 : vector<16x16xf32>
    %340 = arith.truncf %339 : vector<16x16xf32> to vector<16x16xbf16>
    %cst_118 = arith.constant dense<0.000000e+00> : vector<16x8xf32>
    %341 = tpu.matmul %340, %325, %cst_118 {dimension_numbers = #tpu.dot_dimension_numbers<[1], [0], [0], [1], [0, 0, 1, 1], [], []>} : vector<16x16xbf16>, vector<16x8xbf16>, vector<16x8xf32> -> vector<16x8xf32>
    %342 = tpu.concatenate %275, %297, %319, %341 in 1 : vector<16x8xf32>, vector<16x8xf32>, vector<16x8xf32>, vector<16x8xf32> -> vector<16x32xf32>
    %343 = arith.truncf %342 : vector<16x32xf32> to vector<16x32xbf16>
    %c1_119 = arith.constant 1 : index
    %c0_120 = arith.constant 0 : index
    %c0_121 = arith.constant 0 : index
    %344 = vector.load %arg6[%c1_119, %c0_120, %c0_121] : memref<2x32x32xbf16, #tpu.memory_space<vmem>>, vector<1x32x32xbf16>
    %345 = vector.shape_cast %344 : vector<1x32x32xbf16> to vector<32x32xbf16>
    %cst_122 = arith.constant dense<0.000000e+00> : vector<16x32xf32>
    %346 = tpu.matmul %343, %345, %cst_122 {dimension_numbers = #tpu.dot_dimension_numbers<[1], [0], [0], [1], [0, 0, 1, 1], [], []>} : vector<16x32xbf16>, vector<32x32xbf16>, vector<16x32xf32> -> vector<16x32xf32>
    %c1_123 = arith.constant 1 : index
    %c0_124 = arith.constant 0 : index
    %c0_125 = arith.constant 0 : index
    %347 = vector.load %arg7[%c1_123, %c0_124, %c0_125] : memref<2x1x32xf32, #tpu.memory_space<vmem>>, vector<1x1x32xf32>
    %348 = vector.shape_cast %347 : vector<1x1x32xf32> to vector<1x32xf32>
    %349 = vector.broadcast %348 : vector<1x32xf32> to vector<16x32xf32>
    %350 = arith.addf %346, %349 : vector<16x32xf32>
    %351 = arith.addf %350, %245 : vector<16x32xf32>
    %c1_126 = arith.constant 1 : index
    %c0_127 = arith.constant 0 : index
    %c0_128 = arith.constant 0 : index
    %352 = vector.load %arg8[%c1_126, %c0_127, %c0_128] : memref<2x1x32xf32, #tpu.memory_space<vmem>>, vector<1x1x32xf32>
    %353 = vector.shape_cast %352 : vector<1x1x32xf32> to vector<1x32xf32>
    %c1_129 = arith.constant 1 : index
    %c0_130 = arith.constant 0 : index
    %c0_131 = arith.constant 0 : index
    %354 = vector.load %arg9[%c1_129, %c0_130, %c0_131] : memref<2x1x32xf32, #tpu.memory_space<vmem>>, vector<1x1x32xf32>
    %355 = vector.shape_cast %354 : vector<1x1x32xf32> to vector<1x32xf32>
    %cst_132 = arith.constant dense<0.000000e+00> : vector<16xf32>
    %356 = vector.multi_reduction <add>, %351, %cst_132 [1] : vector<16x32xf32> to vector<16xf32>
    %357 = vector.shape_cast %356 : vector<16xf32> to vector<16x1xf32>
    %cst_133 = arith.constant 3.200000e+01 : f32
    %358 = vector.broadcast %cst_133 : f32 to vector<16x1xf32>
    %359 = arith.divf %357, %358 : vector<16x1xf32>
    %360 = vector.broadcast %359 : vector<16x1xf32> to vector<16x32xf32>
    %361 = arith.subf %351, %360 : vector<16x32xf32>
    %362 = arith.mulf %361, %361 : vector<16x32xf32>
    %cst_134 = arith.constant dense<0.000000e+00> : vector<16xf32>
    %363 = vector.multi_reduction <add>, %362, %cst_134 [1] : vector<16x32xf32> to vector<16xf32>
    %364 = vector.shape_cast %363 : vector<16xf32> to vector<16x1xf32>
    %cst_135 = arith.constant 3.200000e+01 : f32
    %365 = vector.broadcast %cst_135 : f32 to vector<16x1xf32>
    %366 = arith.divf %364, %365 : vector<16x1xf32>
    %367 = vector.broadcast %359 : vector<16x1xf32> to vector<16x32xf32>
    %368 = arith.subf %351, %367 : vector<16x32xf32>
    %cst_136 = arith.constant 9.99999996E-13 : f32
    %369 = vector.broadcast %cst_136 : f32 to vector<16x1xf32>
    %370 = arith.addf %366, %369 : vector<16x1xf32>
    %371 = math.rsqrt %370 : vector<16x1xf32>
    %372 = vector.broadcast %371 : vector<16x1xf32> to vector<16x32xf32>
    %373 = arith.mulf %368, %372 : vector<16x32xf32>
    %374 = vector.broadcast %353 : vector<1x32xf32> to vector<16x32xf32>
    %375 = arith.mulf %373, %374 : vector<16x32xf32>
    %376 = vector.broadcast %355 : vector<1x32xf32> to vector<16x32xf32>
    %377 = arith.addf %375, %376 : vector<16x32xf32>
    %378 = arith.truncf %377 : vector<16x32xf32> to vector<16x32xbf16>
    %c1_137 = arith.constant 1 : index
    %c0_138 = arith.constant 0 : index
    %c0_139 = arith.constant 0 : index
    %379 = vector.load %arg10[%c1_137, %c0_138, %c0_139] : memref<2x32x64xbf16, #tpu.memory_space<vmem>>, vector<1x32x64xbf16>
    %380 = vector.shape_cast %379 : vector<1x32x64xbf16> to vector<32x64xbf16>
    %cst_140 = arith.constant dense<0.000000e+00> : vector<16x64xf32>
    %381 = tpu.matmul %378, %380, %cst_140 {dimension_numbers = #tpu.dot_dimension_numbers<[1], [0], [0], [1], [0, 0, 1, 1], [], []>} : vector<16x32xbf16>, vector<32x64xbf16>, vector<16x64xf32> -> vector<16x64xf32>
    %c1_141 = arith.constant 1 : index
    %c0_142 = arith.constant 0 : index
    %c0_143 = arith.constant 0 : index
    %382 = vector.load %arg11[%c1_141, %c0_142, %c0_143] : memref<2x1x64xf32, #tpu.memory_space<vmem>>, vector<1x1x64xf32>
    %383 = vector.shape_cast %382 : vector<1x1x64xf32> to vector<1x64xf32>
    %384 = vector.broadcast %383 : vector<1x64xf32> to vector<16x64xf32>
    %385 = arith.addf %381, %384 : vector<16x64xf32>
    %386 = arith.mulf %385, %385 : vector<16x64xf32>
    %387 = arith.mulf %385, %386 : vector<16x64xf32>
    %cst_144 = arith.constant 4.471500e-02 : f32
    %388 = vector.broadcast %cst_144 : f32 to vector<16x64xf32>
    %389 = arith.mulf %388, %387 : vector<16x64xf32>
    %390 = arith.addf %385, %389 : vector<16x64xf32>
    %cst_145 = arith.constant 0.797884583 : f32
    %391 = vector.broadcast %cst_145 : f32 to vector<16x64xf32>
    %392 = arith.mulf %391, %390 : vector<16x64xf32>
    %393 = math.tanh %392 : vector<16x64xf32>
    %cst_146 = arith.constant 1.000000e+00 : f32
    %394 = vector.broadcast %cst_146 : f32 to vector<16x64xf32>
    %395 = arith.addf %394, %393 : vector<16x64xf32>
    %cst_147 = arith.constant 5.000000e-01 : f32
    %396 = vector.broadcast %cst_147 : f32 to vector<16x64xf32>
    %397 = arith.mulf %396, %395 : vector<16x64xf32>
    %398 = arith.mulf %385, %397 : vector<16x64xf32>
    %399 = arith.truncf %398 : vector<16x64xf32> to vector<16x64xbf16>
    %c1_148 = arith.constant 1 : index
    %c0_149 = arith.constant 0 : index
    %c0_150 = arith.constant 0 : index
    %400 = vector.load %arg12[%c1_148, %c0_149, %c0_150] : memref<2x64x32xbf16, #tpu.memory_space<vmem>>, vector<1x64x32xbf16>
    %401 = vector.shape_cast %400 : vector<1x64x32xbf16> to vector<64x32xbf16>
    %cst_151 = arith.constant dense<0.000000e+00> : vector<16x32xf32>
    %402 = tpu.matmul %399, %401, %cst_151 {dimension_numbers = #tpu.dot_dimension_numbers<[1], [0], [0], [1], [0, 0, 1, 1], [], []>} : vector<16x64xbf16>, vector<64x32xbf16>, vector<16x32xf32> -> vector<16x32xf32>
    %c1_152 = arith.constant 1 : index
    %c0_153 = arith.constant 0 : index
    %c0_154 = arith.constant 0 : index
    %403 = vector.load %arg13[%c1_152, %c0_153, %c0_154] : memref<2x1x32xf32, #tpu.memory_space<vmem>>, vector<1x1x32xf32>
    %404 = vector.shape_cast %403 : vector<1x1x32xf32> to vector<1x32xf32>
    %405 = vector.broadcast %404 : vector<1x32xf32> to vector<16x32xf32>
    %406 = arith.addf %402, %405 : vector<16x32xf32>
    %407 = arith.addf %406, %377 : vector<16x32xf32>
    %c1_155 = arith.constant 1 : index
    %c0_156 = arith.constant 0 : index
    %c0_157 = arith.constant 0 : index
    %408 = vector.load %arg14[%c1_155, %c0_156, %c0_157] : memref<2x1x32xf32, #tpu.memory_space<vmem>>, vector<1x1x32xf32>
    %409 = vector.shape_cast %408 : vector<1x1x32xf32> to vector<1x32xf32>
    %c1_158 = arith.constant 1 : index
    %c0_159 = arith.constant 0 : index
    %c0_160 = arith.constant 0 : index
    %410 = vector.load %arg15[%c1_158, %c0_159, %c0_160] : memref<2x1x32xf32, #tpu.memory_space<vmem>>, vector<1x1x32xf32>
    %411 = vector.shape_cast %410 : vector<1x1x32xf32> to vector<1x32xf32>
    %cst_161 = arith.constant dense<0.000000e+00> : vector<16xf32>
    %412 = vector.multi_reduction <add>, %407, %cst_161 [1] : vector<16x32xf32> to vector<16xf32>
    %413 = vector.shape_cast %412 : vector<16xf32> to vector<16x1xf32>
    %cst_162 = arith.constant 3.200000e+01 : f32
    %414 = vector.broadcast %cst_162 : f32 to vector<16x1xf32>
    %415 = arith.divf %413, %414 : vector<16x1xf32>
    %416 = vector.broadcast %415 : vector<16x1xf32> to vector<16x32xf32>
    %417 = arith.subf %407, %416 : vector<16x32xf32>
    %418 = arith.mulf %417, %417 : vector<16x32xf32>
    %cst_163 = arith.constant dense<0.000000e+00> : vector<16xf32>
    %419 = vector.multi_reduction <add>, %418, %cst_163 [1] : vector<16x32xf32> to vector<16xf32>
    %420 = vector.shape_cast %419 : vector<16xf32> to vector<16x1xf32>
    %cst_164 = arith.constant 3.200000e+01 : f32
    %421 = vector.broadcast %cst_164 : f32 to vector<16x1xf32>
    %422 = arith.divf %420, %421 : vector<16x1xf32>
    %423 = vector.broadcast %415 : vector<16x1xf32> to vector<16x32xf32>
    %424 = arith.subf %407, %423 : vector<16x32xf32>
    %cst_165 = arith.constant 9.99999996E-13 : f32
    %425 = vector.broadcast %cst_165 : f32 to vector<16x1xf32>
    %426 = arith.addf %422, %425 : vector<16x1xf32>
    %427 = math.rsqrt %426 : vector<16x1xf32>
    %428 = vector.broadcast %427 : vector<16x1xf32> to vector<16x32xf32>
    %429 = arith.mulf %424, %428 : vector<16x32xf32>
    %430 = vector.broadcast %409 : vector<1x32xf32> to vector<16x32xf32>
    %431 = arith.mulf %429, %430 : vector<16x32xf32>
    %432 = vector.broadcast %411 : vector<1x32xf32> to vector<16x32xf32>
    %433 = arith.addf %431, %432 : vector<16x32xf32>
    %434 = vector.extract_strided_slice %433 {offsets = [0, 0], sizes = [1, 32], strides = [1, 1]} : vector<16x32xf32> to vector<1x32xf32>
    %435 = vector.extract_strided_slice %433 {offsets = [8, 0], sizes = [1, 32], strides = [1, 1]} : vector<16x32xf32> to vector<1x32xf32>
    %436 = tpu.concatenate %434, %435 in 0 : vector<1x32xf32>, vector<1x32xf32> -> vector<2x32xf32>
    %437 = arith.truncf %436 : vector<2x32xf32> to vector<2x32xbf16>
    %c0_166 = arith.constant 0 : index
    %c0_167 = arith.constant 0 : index
    %438 = vector.load %arg16[%c0_166, %c0_167] : memref<32x32xbf16, #tpu.memory_space<vmem>>, vector<32x32xbf16>
    %cst_168 = arith.constant dense<0.000000e+00> : vector<2x32xf32>
    %439 = tpu.matmul %437, %438, %cst_168 {dimension_numbers = #tpu.dot_dimension_numbers<[1], [0], [0], [1], [0, 0, 1, 1], [], []>} : vector<2x32xbf16>, vector<32x32xbf16>, vector<2x32xf32> -> vector<2x32xf32>
    %c0_169 = arith.constant 0 : index
    %c0_170 = arith.constant 0 : index
    %440 = vector.load %arg17[%c0_169, %c0_170] : memref<1x32xf32, #tpu.memory_space<vmem>>, vector<1x32xf32>
    %441 = vector.broadcast %440 : vector<1x32xf32> to vector<2x32xf32>
    %442 = arith.addf %439, %441 : vector<2x32xf32>
    %443 = math.tanh %442 : vector<2x32xf32>
    %c0_171 = arith.constant 0 : index
    %c0_172 = arith.constant 0 : index
    %444 = vector.load %arg20[%c0_171, %c0_172] : memref<2x32xf32, #tpu.memory_space<vmem>>, vector<2x32xf32>
    tpu.vector_store %arg20[%c0_171, %c0_172], %443 {strides = array<i32>} : memref<2x32xf32, #tpu.memory_space<vmem>>, vector<2x32xf32>,
    %445 = arith.truncf %433 : vector<16x32xf32> to vector<16x32xbf16>
    %c0_173 = arith.constant 0 : index
    %c0_174 = arith.constant 0 : index
    %446 = vector.load %arg18[%c0_173, %c0_174] : memref<32x128xbf16, #tpu.memory_space<vmem>>, vector<32x128xbf16>
    %cst_175 = arith.constant dense<0.000000e+00> : vector<16x128xf32>
    %447 = tpu.matmul %445, %446, %cst_175 {dimension_numbers = #tpu.dot_dimension_numbers<[1], [0], [0], [1], [0, 0, 1, 1], [], []>} : vector<16x32xbf16>, vector<32x128xbf16>, vector<16x128xf32> -> vector<16x128xf32>
    %c0_176 = arith.constant 0 : index
    %c0_177 = arith.constant 0 : index
    %448 = vector.load %arg19[%c0_176, %c0_177] : memref<1x128xf32, #tpu.memory_space<vmem>>, vector<1x128xf32>
    %449 = vector.broadcast %448 : vector<1x128xf32> to vector<16x128xf32>
    %450 = arith.addf %447, %449 : vector<16x128xf32>
    %c0_178 = arith.constant 0 : index
    %c0_179 = arith.constant 0 : index
    %451 = vector.load %arg21[%c0_178, %c0_179] : memref<16x128xf32, #tpu.memory_space<vmem>>, vector<16x128xf32>
    tpu.vector_store %arg21[%c0_178, %c0_179], %450 {strides = array<i32>} : memref<16x128xf32, #tpu.memory_space<vmem>>, vector<16x128xf32>,
    return
  }
}

</mosaic_0001>

<llo_original>
// kernel: model_forward.1
$region0: #{model_forward.1}
  #allocation0 [shape = 'u32[]', space=smem, size = 0x4, offset = 0x4, fixed_abs, tag = 'smem constant byte address 0x4 - core index']
  #allocation1 [shape = 'u32[72,128]{1,0:T(1,128)}', space=vmem, size = 0x9000, scoped, tag = 'internal scratch']
  %s0 = inlined_call_operand.vmem [shape: f32[16,32], index: 0, kind: input, shape index: {}]
  %s1 = inlined_call_operand.vmem [shape: f32[1,16], index: 1, kind: input, shape index: {}]
  %s2 = inlined_call_operand.vmem [shape: f32[1,32], index: 2, kind: input, shape index: {}]
  %s3 = inlined_call_operand.vmem [shape: f32[1,32], index: 3, kind: input, shape index: {}]
  %s4 = inlined_call_operand.vmem [shape: bf16[2,32,96], index: 4, kind: input, shape index: {}]
  %s5 = inlined_call_operand.vmem [shape: f32[2,1,96], index: 5, kind: input, shape index: {}]
  %s6 = inlined_call_operand.vmem [shape: bf16[2,32,32], index: 6, kind: input, shape index: {}]
  %s7 = inlined_call_operand.vmem [shape: f32[2,1,32], index: 7, kind: input, shape index: {}]
  %s8 = inlined_call_operand.vmem [shape: f32[2,1,32], index: 8, kind: input, shape index: {}]
  %s9 = inlined_call_operand.vmem [shape: f32[2,1,32], index: 9, kind: input, shape index: {}]
  %s10 = inlined_call_operand.vmem [shape: bf16[2,32,64], index: 10, kind: input, shape index: {}]
  %s11 = inlined_call_operand.vmem [shape: f32[2,1,64], index: 11, kind: input, shape index: {}]
  %s12 = inlined_call_operand.vmem [shape: bf16[2,64,32], index: 12, kind: input, shape index: {}]
  %s13 = inlined_call_operand.vmem [shape: f32[2,1,32], index: 13, kind: input, shape index: {}]
  %s14 = inlined_call_operand.vmem [shape: f32[2,1,32], index: 14, kind: input, shape index: {}]
  %s15 = inlined_call_operand.vmem [shape: f32[2,1,32], index: 15, kind: input, shape index: {}]
  %s16 = inlined_call_operand.vmem [shape: bf16[32,32], index: 16, kind: input, shape index: {}]
  %s17 = inlined_call_operand.vmem [shape: f32[1,32], index: 17, kind: input, shape index: {}]
  %s18 = inlined_call_operand.vmem [shape: bf16[32,128], index: 18, kind: input, shape index: {}]
  %s19 = inlined_call_operand.vmem [shape: f32[1,128], index: 19, kind: input, shape index: {}]
  %s20 = inlined_call_operand.hbm [shape: f32[2,32], index: 20, kind: output, shape index: {0}]
  %s21 = inlined_call_operand.hbm [shape: f32[16,128], index: 21, kind: output, shape index: {1}]
  %22 = xla_tuple %s20, %s21
  %s23 = sld [smem:[#allocation0]]
  $region98: #{model_forward.1} parent=0
    _
  %s25 = ssub.s32 1, %s23
  %s26 = scalar_select 0, %s25, %s23
  $region1: #{model_forward.1} parent=0
    #allocation2 [shape = 'u8[1024]{0}', space=vmem, size = 0x400, scoped, tag = 'output window, operand 0, single buffered']
    #allocation3 [shape = 's32[1]{0}', space=sflag, size = 0x4, scoped, tag = 'scoped memory for model_forward.1']
    #allocation4 [shape = 'u8[8192]{0}', space=vmem, size = 0x2000, scoped, tag = 'output window, operand 1, single buffered']
    #allocation5 [shape = 's32[1]{0}', space=sflag, size = 0x4, scoped, tag = 'scoped memory for model_forward.1']
    %27 = vsyncpa [#allocation3], 0
    %28 = vsyncpa [#allocation5], 0
    // Predicated region
    $region2: #{model_forward.1} parent=1 // pred_check
      _
    $region3: #{model_forward.1} parent=1 // pred_check_branch
      %30 = sbr.rel (0) target = $region5
    $region4: #{model_forward.1} parent=1 // pred_region
      _
    $region5: #{model_forward.1} parent=1 // pred_fallthru
      _
    // Predicated region
    $region6: #{model_forward.1} parent=1 // pred_check
      _
    $region7: #{model_forward.1} parent=1 // pred_check_branch
      %32 = sbr.rel (0) target = $region9
    $region8: #{model_forward.1} parent=1 // pred_region
      _
    $region9: #{model_forward.1} parent=1 // pred_fallthru
      _
    // Predicated region
    $region10: #{model_forward.1} parent=1 // pred_check
      _
    $region11: #{model_forward.1} parent=1 // pred_check_branch
      %34 = sbr.rel (0) target = $region13
    $region12: #{model_forward.1} parent=1 // pred_region
      _
    $region13: #{model_forward.1} parent=1 // pred_fallthru
      _
    // Predicated region
    $region14: #{model_forward.1} parent=1 // pred_check
      _
    $region15: #{model_forward.1} parent=1 // pred_check_branch
      %36 = sbr.rel (0) target = $region17
    $region16: #{model_forward.1} parent=1 // pred_region
      _
    $region17: #{model_forward.1} parent=1 // pred_fallthru
      _
    // Predicated region
    $region18: #{model_forward.1} parent=1 // pred_check
      _
    $region19: #{model_forward.1} parent=1 // pred_check_branch
      %38 = sbr.rel (0) target = $region21
    $region20: #{model_forward.1} parent=1 // pred_region
      _
    $region21: #{model_forward.1} parent=1 // pred_fallthru
      _
    // Predicated region
    $region22: #{model_forward.1} parent=1 // pred_check
      _
    $region23: #{model_forward.1} parent=1 // pred_check_branch
      %40 = sbr.rel (0) target = $region25
    $region24: #{model_forward.1} parent=1 // pred_region
      _
    $region25: #{model_forward.1} parent=1 // pred_fallthru
      _
    // Predicated region
    $region26: #{model_forward.1} parent=1 // pred_check
      _
    $region27: #{model_forward.1} parent=1 // pred_check_branch
      %42 = sbr.rel (0) target = $region29
    $region28: #{model_forward.1} parent=1 // pred_region
      _
    $region29: #{model_forward.1} parent=1 // pred_fallthru
      _
    // Predicated region
    $region30: #{model_forward.1} parent=1 // pred_check
      _
    $region31: #{model_forward.1} parent=1 // pred_check_branch
      %44 = sbr.rel (0) target = $region33
    $region32: #{model_forward.1} parent=1 // pred_region
      _
    $region33: #{model_forward.1} parent=1 // pred_fallthru
      _
    // Predicated region
    $region34: #{model_forward.1} parent=1 // pred_check
      _
    $region35: #{model_forward.1} parent=1 // pred_check_branch
      %46 = sbr.rel (0) target = $region37
    $region36: #{model_forward.1} parent=1 // pred_region
      _
    $region37: #{model_forward.1} parent=1 // pred_fallthru
      _
    // Predicated region
    $region38: #{model_forward.1} parent=1 // pred_check
      _
    $region39: #{model_forward.1} parent=1 // pred_check_branch
      %48 = sbr.rel (0) target = $region41
    $region40: #{model_forward.1} parent=1 // pred_region
      _
    $region41: #{model_forward.1} parent=1 // pred_fallthru
      _
    // Predicated region
    $region42: #{model_forward.1} parent=1 // pred_check
      _
    $region43: #{model_forward.1} parent=1 // pred_check_branch
      %50 = sbr.rel (0) target = $region45
    $region44: #{model_forward.1} parent=1 // pred_region
      _
    $region45: #{model_forward.1} parent=1 // pred_fallthru
      _
    // Predicated region
    $region46: #{model_forward.1} parent=1 // pred_check
      _
    $region47: #{model_forward.1} parent=1 // pred_check_branch
      %52 = sbr.rel (0) target = $region49
    $region48: #{model_forward.1} parent=1 // pred_region
      _
    $region49: #{model_forward.1} parent=1 // pred_fallthru
      _
    // Predicated region
    $region50: #{model_forward.1} parent=1 // pred_check
      _
    $region51: #{model_forward.1} parent=1 // pred_check_branch
      %54 = sbr.rel (0) target = $region53
    $region52: #{model_forward.1} parent=1 // pred_region
      _
    $region53: #{model_forward.1} parent=1 // pred_fallthru
      _
    // Predicated region
    $region54: #{model_forward.1} parent=1 // pred_check
      _
    $region55: #{model_forward.1} parent=1 // pred_check_branch
      %56 = sbr.rel (0) target = $region57
    $region56: #{model_forward.1} parent=1 // pred_region
      _
    $region57: #{model_forward.1} parent=1 // pred_fallthru
      _
    // Predicated region
    $region58: #{model_forward.1} parent=1 // pred_check
      _
    $region59: #{model_forward.1} parent=1 // pred_check_branch
      %58 = sbr.rel (0) target = $region61
    $region60: #{model_forward.1} parent=1 // pred_region
      _
    $region61: #{model_forward.1} parent=1 // pred_fallthru
      _
    // Predicated region
    $region62: #{model_forward.1} parent=1 // pred_check
      _
    $region63: #{model_forward.1} parent=1 // pred_check_branch
      %60 = sbr.rel (0) target = $region65
    $region64: #{model_forward.1} parent=1 // pred_region
      _
    $region65: #{model_forward.1} parent=1 // pred_fallthru
      _
    // Predicated region
    $region66: #{model_forward.1} parent=1 // pred_check
      _
    $region67: #{model_forward.1} parent=1 // pred_check_branch
      %62 = sbr.rel (0) target = $region69
    $region68: #{model_forward.1} parent=1 // pred_region
      _
    $region69: #{model_forward.1} parent=1 // pred_fallthru
      _
    // Predicated region
    $region70: #{model_forward.1} parent=1 // pred_check
      _
    $region71: #{model_forward.1} parent=1 // pred_check_branch
      %64 = sbr.rel (0) target = $region73
    $region72: #{model_forward.1} parent=1 // pred_region
      _
    $region73: #{model_forward.1} parent=1 // pred_fallthru
      _
    // Predicated region
    $region74: #{model_forward.1} parent=1 // pred_check
      _
    $region75: #{model_forward.1} parent=1 // pred_check_branch
      %66 = sbr.rel (0) target = $region77
    $region76: #{model_forward.1} parent=1 // pred_region
      _
    $region77: #{model_forward.1} parent=1 // pred_fallthru
      _
    // Predicated region
    $region78: #{model_forward.1} parent=1 // pred_check
      _
    $region79: #{model_forward.1} parent=1 // pred_check_branch
      %68 = sbr.rel (0) target = $region81
    $region80: #{model_forward.1} parent=1 // pred_region
      _
    $region81: #{model_forward.1} parent=1 // pred_fallthru
      _
    %v70 = vld [vmem:[%s0] sm:$0xff]
    %v71 = vld [vmem:[%s0 + $0x8] sm:$0xff]
    %v72 = vld [vmem:[%s2] sm:$0x1]
    %v73 = vld [vmem:[%s3] sm:$0x1]
    %vm74 = vcmask 261120
    %v75 = vsel %vm74, %v70, 0.0
    %76 = vadd.xlane.f32.xlu0 %v75
    %v77 = vpop.xlane.xlu0 %76
    %v78 = vsel %vm74, %v71, 0.0
    %79 = vadd.xlane.f32.xlu0 %v78
    %v80 = vpop.xlane.xlu0 %79
    %v81 = vrcp.pop 32.0
    %v82 = vmul.f32 32.0, %v81
    %v83 = vsub.f32 1.0, %v82
    %v84 = vmul.f32 %v81, %v83
    %v85 = vadd.f32 %v81, %v84
    %vm86 = vweird.f32 %v81
    %v87 = vsel %vm86, %v81, %v85
    %v88 = vmul.f32 %v77, %v87
    %v89 = vmul.f32 %v80, %v87
    %v90 = vsub.f32 %v70, %v88
    %v91 = vsub.f32 %v71, %v89
    %v92 = vmul.f32 %v90, %v90
    %v93 = vmul.f32 %v91, %v91
    %v94 = vsel %vm74, %v92, 0.0
    %95 = vadd.xlane.f32.xlu0 %v94
    %v96 = vpop.xlane.xlu0 %95
    %v97 = vsel %vm74, %v93, 0.0
    %98 = vadd.xlane.f32.xlu0 %v97
    %v99 = vpop.xlane.xlu0 %98
    %v100 = vmul.f32 %v96, %v87
    %v101 = vmul.f32 %v99, %v87
    %v102 = vadd.f32 %v100, 1e-12
    %v103 = vadd.f32 %v101, 1e-12
    %v104 = vrsqrt.pop %v102
    %v105 = vmul.f32 %v104, %v102
    %v106 = vmul.f32 %v105, %v104
    %v107 = vmul.f32 0.5, %v106
    %v108 = vsub.f32 1.5, %v107
    %v109 = vmul.f32 %v104, %v108
    %vm110 = vweird.f32 %v102
    %vm111 = vweird.f32 %v104
    %vm112 = vmor %vm110, %vm111
    %v113 = vsel %vm112, %v104, %v109
    %v114 = vrsqrt.pop %v103
    %v115 = vmul.f32 %v114, %v103
    %v116 = vmul.f32 %v115, %v114
    %v117 = vmul.f32 0.5, %v116
    %v118 = vsub.f32 1.5, %v117
    %v119 = vmul.f32 %v114, %v118
    %vm120 = vweird.f32 %v103
    %vm121 = vweird.f32 %v114
    %vm122 = vmor %vm120, %vm121
    %v123 = vsel %vm122, %v114, %v119
    %v124 = vmul.f32 %v90, %v113
    %v125 = vmul.f32 %v91, %v123
    %v127 = vperm.slane %v72, 0
    %v129 = vmul.f32 %v124, %v127
    %v130 = vmul.f32 %v125, %v127
    %v132 = vperm.slane %v73, 0
    %v134 = vadd.f32 %v129, %v132
    %v135 = vadd.f32 %v130, %v132
    %v136 = vlaneseq
    %v137 = vshrl.u32 %v136, 7
    %v138 = vadd.s32 %v137, 8
    %v139 = vlaneseq
    %v140 = vand.u32 %v139, 127
    %vm141 = vcmp.ge.s32.totalorder %v137, 0
    %vm142 = vcmp.ge.s32.totalorder %v138, 0
    %vm143 = vcmp.lt.s32.totalorder %v137, 8
    %vm144 = vcmp.lt.s32.totalorder %v138, 8
    %vm145 = vmand %vm141, %vm143
    %vm146 = vmand %vm142, %vm144
    %vm147 = vcmp.ge.s32.totalorder %v140, 0
    %vm148 = vmand %vm145, %vm147
    %vm149 = vmand %vm146, %vm147
    %vm150 = vcmp.lt.s32.totalorder %v140, 8
    %vm151 = vmand %vm148, %vm150
    %vm152 = vmand %vm149, %vm150
    %vm153 = vcmp.ge.s32.totalorder %v137, 8
    %vm154 = vcmp.ge.s32.totalorder %v138, 8
    %vm155 = vcmp.lt.s32.totalorder %v137, 16
    %vm156 = vcmp.lt.s32.totalorder %v138, 16
    %vm157 = vmand %vm153, %vm155
    %vm158 = vmand %vm154, %vm156
    %vm159 = vcmp.ge.s32.totalorder %v140, 8
    %vm160 = vmand %vm157, %vm159
    %vm161 = vmand %vm158, %vm159
    %vm162 = vcmp.lt.s32.totalorder %v140, 16
    %vm163 = vmand %vm160, %vm162
    %vm164 = vmand %vm161, %vm162
    %vm165 = vmor %vm151, %vm163
    %vm166 = vmor %vm152, %vm164
    %v167 = vld [vmem:[%s1] sm:$0x1]
    %vm168 = vcmp.gt.f32.partialorder %v167, 0.5
    %v169 = vsel %vm168, 1, 0
    %v170 = vperm.slane %v169, 0
    %vm171 = vcmp.eq.s32.totalorder %v170, 1
    %vm172 = vmand %vm165, %vm171
    %vm173 = vmand %vm166, %vm171
    %v174 = vsel %vm172, 0.0, -1e+09
    %v175 = vsel %vm173, 0.0, -1e+09
    %v176 = vpack.c.bf16 %v135, %v134
    %v177 = vld [vmem:[%s4] sm:$0xf]
    %v178 = vld [vmem:[%s4 + $0x4] sm:$0xf]
    %v179 = vld [vmem:[%s4 + $0x8] sm:$0xf]
    %v180 = vld [vmem:[%s4 + $0xc] sm:$0xf]
    %v181 = vld [vmem:[%s5] sm:$0x1]
    %v183 = vperm.slane %v181, 0
    %v189 = vunpack.c.l.b16 %v177
    %v190 = vunpack.c.l.b16 %v178
    %v191 = vunpack.c.l.b16 %v179
    %v192 = vunpack.c.l.b16 %v180
    %v193 = vpack.c.b16 %v190, %v189
    %v194 = vpack.c.b16 %v192, %v191
    %v198 = vsel %vm74, %v176, 0
    %200 = vmatpush.bf16.msra.mxu0 0
    %201 = vmatpush.bf16.msra.mxu0 0
    %202 = vmatpush.bf16.msra.mxu0 0
    %203 = vmatpush.bf16.msra.mxu0 0
    %204 = vmatpush.bf16.msra.mxu0 0
    %205 = vmatpush.bf16.msra.mxu0 0
    %206 = vmatpush.bf16.msra.mxu0 %v194
    %207 = vmatpush.bf16.msra.mxu0 %v193
    %208 = vmatmul.bf16.gmra.mxu0 %v198
    %v209 = vpop.f32.mrf.mxu0
    %v210 = vadd.f32 %v183, %v209
    %v211 = vpop.f32.mrf.mxu0
    %v212 = vadd.f32 %v183, %v211
    %213 = vdwg.mxu0
    %v214 = vpack.c.bf16 %v212, %v210
    %216 = vrot.lane.b32.xlu0 %v214, 96
    %v217 = vpop.permute.xlu0 %216
    %vm218 = vcmask 64512
    %v220 = vsel %vm218, %v214, 0
    %v223 = vsel %vm218, %v217, 0
    %225 = vmatpush.bf16.xpose.msra.mxu0 0
    %226 = vmatpush.bf16.xpose.msra.mxu0 0
    %227 = vmatpush.bf16.xpose.msra.mxu0 0
    %228 = vmatpush.bf16.xpose.msra.mxu0 0
    %229 = vmatpush.bf16.xpose.msra.mxu0 0
    %230 = vmatpush.bf16.xpose.msra.mxu0 0
    %231 = vmatpush.bf16.xpose.msra.mxu0 0
    %232 = vmatpush.bf16.xpose.msra.mxu0 %v223
    %233 = vmatmul.bf16.gmra.mxu0 %v220
    %v234 = vpop.f32.mrf.mxu0
    %v235 = vadd.f32 0.0, %v234
    %v236 = vpop.f32.mrf.mxu0
    %v237 = vadd.f32 0.0, %v236
    %238 = vdwg.mxu0
    %v239 = vmul.f32 %v235, 0.35355338
    %v240 = vmul.f32 %v237, 0.35355338
    %v241 = vadd.f32 %v239, %v174
    %v242 = vadd.f32 %v240, %v175
    %vm243 = vcmask 130048
    %v244 = vsel %vm243, %v241, -inf
    %245 = vmax.xlane.f32.xlu0 %v244
    %v246 = vpop.xlane.xlu0 %245
    %v247 = vsel %vm243, %v242, -inf
    %248 = vmax.xlane.f32.xlu0 %v247
    %v249 = vpop.xlane.xlu0 %248
    %v250 = vsub.f32 %v241, %v246
    %v251 = vsub.f32 %v242, %v249
    %v252 = vmul.f32 %v250, 1.442695
    %v253 = vpow.pop %v252
    %v254 = vmul.f32 %v251, 1.442695
    %v255 = vpow.pop %v254
    %v256 = vsel %vm243, %v253, 0.0
    %257 = vadd.xlane.f32.xlu0 %v256
    %v258 = vpop.xlane.xlu0 %257
    %v259 = vsel %vm243, %v255, 0.0
    %260 = vadd.xlane.f32.xlu0 %v259
    %v261 = vpop.xlane.xlu0 %260
    %v262 = vrcp.pop %v258
    %v263 = vrcp.pop %v261
    %v264 = vmul.f32 %v253, %v262
    %v265 = vmul.f32 %v255, %v263
    %v266 = vpack.c.bf16 %v265, %v264
    %267 = vrot.lane.b32.xlu0 %v214, 64
    %v268 = vpop.permute.xlu0 %267
    %v271 = vsel %vm243, %v266, 0
    %273 = vmatpush.bf16.msra.mxu0 0
    %274 = vmatpush.bf16.msra.mxu0 0
    %275 = vmatpush.bf16.msra.mxu0 0
    %276 = vmatpush.bf16.msra.mxu0 0
    %277 = vmatpush.bf16.msra.mxu0 0
    %278 = vmatpush.bf16.msra.mxu0 0
    %279 = vmatpush.bf16.msra.mxu0 0
    %280 = vmatpush.bf16.msra.mxu0 %v268
    %281 = vmatmul.bf16.gmra.mxu0 %v271
    %v282 = vpop.f32.mrf.mxu0
    %v283 = vadd.f32 0.0, %v282
    %v284 = vpop.f32.mrf.mxu0
    %v285 = vadd.f32 0.0, %v284
    %286 = vdwg.mxu0
    %287 = vrot.lane.b32.xlu0 %v214, 120
    %v288 = vpop.permute.xlu0 %287
    %289 = vrot.lane.b32.xlu0 %v214, 88
    %v290 = vpop.permute.xlu0 %289
    %v292 = vsel %vm218, %v288, 0
    %v295 = vsel %vm218, %v290, 0
    %297 = vmatpush.bf16.xpose.msra.mxu0 0
    %298 = vmatpush.bf16.xpose.msra.mxu0 0
    %299 = vmatpush.bf16.xpose.msra.mxu0 0
    %300 = vmatpush.bf16.xpose.msra.mxu0 0
    %301 = vmatpush.bf16.xpose.msra.mxu0 0
    %302 = vmatpush.bf16.xpose.msra.mxu0 0
    %303 = vmatpush.bf16.xpose.msra.mxu0 0
    %304 = vmatpush.bf16.xpose.msra.mxu0 %v295
    %305 = vmatmul.bf16.gmra.mxu0 %v292
    %v306 = vpop.f32.mrf.mxu0
    %v307 = vadd.f32 0.0, %v306
    %v308 = vpop.f32.mrf.mxu0
    %v309 = vadd.f32 0.0, %v308
    %310 = vdwg.mxu0
    %v311 = vmul.f32 %v307, 0.35355338
    %v312 = vmul.f32 %v309, 0.35355338
    %v313 = vadd.f32 %v311, %v174
    %v314 = vadd.f32 %v312, %v175
    %v315 = vsel %vm243, %v313, -inf
    %316 = vmax.xlane.f32.xlu0 %v315
    %v317 = vpop.xlane.xlu0 %316
    %v318 = vsel %vm243, %v314, -inf
    %319 = vmax.xlane.f32.xlu0 %v318
    %v320 = vpop.xlane.xlu0 %319
    %v321 = vsub.f32 %v313, %v317
    %v322 = vsub.f32 %v314, %v320
    %v323 = vmul.f32 %v321, 1.442695
    %v324 = vpow.pop %v323
    %v325 = vmul.f32 %v322, 1.442695
    %v326 = vpow.pop %v325
    %v327 = vsel %vm243, %v324, 0.0
    %328 = vadd.xlane.f32.xlu0 %v327
    %v329 = vpop.xlane.xlu0 %328
    %v330 = vsel %vm243, %v326, 0.0
    %331 = vadd.xlane.f32.xlu0 %v330
    %v332 = vpop.xlane.xlu0 %331
    %v333 = vrcp.pop %v329
    %v334 = vrcp.pop %v332
    %v335 = vmul.f32 %v324, %v333
    %v336 = vmul.f32 %v326, %v334
    %v337 = vpack.c.bf16 %v336, %v335
    %338 = vrot.lane.b32.xlu0 %v214, 56
    %v339 = vpop.permute.xlu0 %338
    %v342 = vsel %vm243, %v337, 0
    %344 = vmatpush.bf16.msra.mxu0 0
    %345 = vmatpush.bf16.msra.mxu0 0
    %346 = vmatpush.bf16.msra.mxu0 0
    %347 = vmatpush.bf16.msra.mxu0 0
    %348 = vmatpush.bf16.msra.mxu0 0
    %349 = vmatpush.bf16.msra.mxu0 0
    %350 = vmatpush.bf16.msra.mxu0 0
    %351 = vmatpush.bf16.msra.mxu0 %v339
    %352 = vmatmul.bf16.gmra.mxu0 %v342
    %v353 = vpop.f32.mrf.mxu0
    %v354 = vadd.f32 0.0, %v353
    %v355 = vpop.f32.mrf.mxu0
    %v356 = vadd.f32 0.0, %v355
    %357 = vdwg.mxu0
    %358 = vrot.lane.b32.xlu0 %v214, 112
    %v359 = vpop.permute.xlu0 %358
    %360 = vrot.lane.b32.xlu0 %v214, 80
    %v361 = vpop.permute.xlu0 %360
    %v363 = vsel %vm218, %v359, 0
    %v366 = vsel %vm218, %v361, 0
    %368 = vmatpush.bf16.xpose.msra.mxu0 0
    %369 = vmatpush.bf16.xpose.msra.mxu0 0
    %370 = vmatpush.bf16.xpose.msra.mxu0 0
    %371 = vmatpush.bf16.xpose.msra.mxu0 0
    %372 = vmatpush.bf16.xpose.msra.mxu0 0
    %373 = vmatpush.bf16.xpose.msra.mxu0 0
    %374 = vmatpush.bf16.xpose.msra.mxu0 0
    %375 = vmatpush.bf16.xpose.msra.mxu0 %v366
    %376 = vmatmul.bf16.gmra.mxu0 %v363
    %v377 = vpop.f32.mrf.mxu0
    %v378 = vadd.f32 0.0, %v377
    %v379 = vpop.f32.mrf.mxu0
    %v380 = vadd.f32 0.0, %v379
    %381 = vdwg.mxu0
    %v382 = vmul.f32 %v378, 0.35355338
    %v383 = vmul.f32 %v380, 0.35355338
    %v384 = vadd.f32 %v382, %v174
    %v385 = vadd.f32 %v383, %v175
    %v386 = vsel %vm243, %v384, -inf
    %387 = vmax.xlane.f32.xlu0 %v386
    %v388 = vpop.xlane.xlu0 %387
    %v389 = vsel %vm243, %v385, -inf
    %390 = vmax.xlane.f32.xlu0 %v389
    %v391 = vpop.xlane.xlu0 %390
    %v392 = vsub.f32 %v384, %v388
    %v393 = vsub.f32 %v385, %v391
    %v394 = vmul.f32 %v392, 1.442695
    %v395 = vpow.pop %v394
    %v396 = vmul.f32 %v393, 1.442695
    %v397 = vpow.pop %v396
    %v398 = vsel %vm243, %v395, 0.0
    %399 = vadd.xlane.f32.xlu0 %v398
    %v400 = vpop.xlane.xlu0 %399
    %v401 = vsel %vm243, %v397, 0.0
    %402 = vadd.xlane.f32.xlu0 %v401
    %v403 = vpop.xlane.xlu0 %402
    %v404 = vrcp.pop %v400
    %v405 = vrcp.pop %v403
    %v406 = vmul.f32 %v395, %v404
    %v407 = vmul.f32 %v397, %v405
    %v408 = vpack.c.bf16 %v407, %v406
    %409 = vrot.lane.b32.xlu0 %v214, 48
    %v410 = vpop.permute.xlu0 %409
    %v413 = vsel %vm243, %v408, 0
    %415 = vmatpush.bf16.msra.mxu0 0
    %416 = vmatpush.bf16.msra.mxu0 0
    %417 = vmatpush.bf16.msra.mxu0 0
    %418 = vmatpush.bf16.msra.mxu0 0
    %419 = vmatpush.bf16.msra.mxu0 0
    %420 = vmatpush.bf16.msra.mxu0 0
    %421 = vmatpush.bf16.msra.mxu0 0
    %422 = vmatpush.bf16.msra.mxu0 %v410
    %423 = vmatmul.bf16.gmra.mxu0 %v413
    %v424 = vpop.f32.mrf.mxu0
    %v425 = vadd.f32 0.0, %v424
    %v426 = vpop.f32.mrf.mxu0
    %v427 = vadd.f32 0.0, %v426
    %428 = vdwg.mxu0
    %429 = vrot.lane.b32.xlu0 %v214, 104
    %v430 = vpop.permute.xlu0 %429
    %431 = vrot.lane.b32.xlu0 %v214, 72
    %v432 = vpop.permute.xlu0 %431
    %v434 = vsel %vm218, %v430, 0
    %v437 = vsel %vm218, %v432, 0
    %439 = vmatpush.bf16.xpose.msra.mxu0 0
    %440 = vmatpush.bf16.xpose.msra.mxu0 0
    %441 = vmatpush.bf16.xpose.msra.mxu0 0
    %442 = vmatpush.bf16.xpose.msra.mxu0 0
    %443 = vmatpush.bf16.xpose.msra.mxu0 0
    %444 = vmatpush.bf16.xpose.msra.mxu0 0
    %445 = vmatpush.bf16.xpose.msra.mxu0 0
    %446 = vmatpush.bf16.xpose.msra.mxu0 %v437
    %447 = vmatmul.bf16.gmra.mxu0 %v434
    %v448 = vpop.f32.mrf.mxu0
    %v449 = vadd.f32 0.0, %v448
    %v450 = vpop.f32.mrf.mxu0
    %v451 = vadd.f32 0.0, %v450
    %452 = vdwg.mxu0
    %v453 = vmul.f32 %v449, 0.35355338
    %v454 = vmul.f32 %v451, 0.35355338
    %v455 = vadd.f32 %v453, %v174
    %v456 = vadd.f32 %v454, %v175
    %v457 = vsel %vm243, %v455, -inf
    %458 = vmax.xlane.f32.xlu0 %v457
    %v459 = vpop.xlane.xlu0 %458
    %v460 = vsel %vm243, %v456, -inf
    %461 = vmax.xlane.f32.xlu0 %v460
    %v462 = vpop.xlane.xlu0 %461
    %v463 = vsub.f32 %v455, %v459
    %v464 = vsub.f32 %v456, %v462
    %v465 = vmul.f32 %v463, 1.442695
    %v466 = vpow.pop %v465
    %v467 = vmul.f32 %v464, 1.442695
    %v468 = vpow.pop %v467
    %v469 = vsel %vm243, %v466, 0.0
    %470 = vadd.xlane.f32.xlu0 %v469
    %v471 = vpop.xlane.xlu0 %470
    %v472 = vsel %vm243, %v468, 0.0
    %473 = vadd.xlane.f32.xlu0 %v472
    %v474 = vpop.xlane.xlu0 %473
    %v475 = vrcp.pop %v471
    %v476 = vrcp.pop %v474
    %v477 = vmul.f32 %v466, %v475
    %v478 = vmul.f32 %v468, %v476
    %v479 = vpack.c.bf16 %v478, %v477
    %480 = vrot.lane.b32.xlu0 %v214, 40
    %v481 = vpop.permute.xlu0 %480
    %v484 = vsel %vm243, %v479, 0
    %486 = vmatpush.bf16.msra.mxu0 0
    %487 = vmatpush.bf16.msra.mxu0 0
    %488 = vmatpush.bf16.msra.mxu0 0
    %489 = vmatpush.bf16.msra.mxu0 0
    %490 = vmatpush.bf16.msra.mxu0 0
    %491 = vmatpush.bf16.msra.mxu0 0
    %492 = vmatpush.bf16.msra.mxu0 0
    %493 = vmatpush.bf16.msra.mxu0 %v481
    %494 = vmatmul.bf16.gmra.mxu0 %v484
    %v495 = vpop.f32.mrf.mxu0
    %v496 = vadd.f32 0.0, %v495
    %v497 = vpop.f32.mrf.mxu0
    %v498 = vadd.f32 0.0, %v497
    %499 = vdwg.mxu0
    %502 = vrot.lane.b32.xlu0 %v354, 8
    %v503 = vpop.permute.xlu0 %502
    %504 = vrot.lane.b32.xlu0 %v356, 8
    %v505 = vpop.permute.xlu0 %504
    %510 = vrot.lane.b32.xlu0 %v425, 16
    %v511 = vpop.permute.xlu0 %510
    %512 = vrot.lane.b32.xlu0 %v427, 16
    %v513 = vpop.permute.xlu0 %512
    %518 = vrot.lane.b32.xlu0 %v496, 24
    %v519 = vpop.permute.xlu0 %518
    %520 = vrot.lane.b32.xlu0 %v498, 24
    %v521 = vpop.permute.xlu0 %520
    %v524 = vsel %vm218, %v283, %v503
    %v525 = vsel %vm218, %v285, %v505
    %v526 = vsel %vm243, %v524, %v511
    %v527 = vsel %vm243, %v525, %v513
    %vm528 = vcmask 195584
    %v529 = vsel %vm528, %v526, %v519
    %v530 = vsel %vm528, %v527, %v521
    %v531 = vpack.c.bf16 %v530, %v529
    %v532 = vld [vmem:[%s6] sm:$0xf]
    %v533 = vld [vmem:[%s6 + $0x4] sm:$0xf]
    %v534 = vld [vmem:[%s6 + $0x8] sm:$0xf]
    %v535 = vld [vmem:[%s6 + $0xc] sm:$0xf]
    %v536 = vld [vmem:[%s7] sm:$0x1]
    %v538 = vperm.slane %v536, 0
    %v544 = vunpack.c.l.b16 %v532
    %v545 = vunpack.c.l.b16 %v533
    %v546 = vunpack.c.l.b16 %v534
    %v547 = vunpack.c.l.b16 %v535
    %v548 = vpack.c.b16 %v545, %v544
    %v549 = vpack.c.b16 %v547, %v546
    %v553 = vsel %vm74, %v531, 0
    %555 = vmatpush.bf16.msra.mxu0 0
    %556 = vmatpush.bf16.msra.mxu0 0
    %557 = vmatpush.bf16.msra.mxu0 0
    %558 = vmatpush.bf16.msra.mxu0 0
    %559 = vmatpush.bf16.msra.mxu0 0
    %560 = vmatpush.bf16.msra.mxu0 0
    %561 = vmatpush.bf16.msra.mxu0 %v549
    %562 = vmatpush.bf16.msra.mxu0 %v548
    %563 = vmatmul.bf16.gmra.mxu0 %v553
    %v564 = vpop.f32.mrf.mxu0
    %v565 = vadd.f32 %v538, %v564
    %v566 = vpop.f32.mrf.mxu0
    %v567 = vadd.f32 %v538, %v566
    %568 = vdwg.mxu0
    %v569 = vadd.f32 %v565, %v134
    %v570 = vadd.f32 %v567, %v135
    %v571 = vld [vmem:[%s8] sm:$0x1]
    %v572 = vld [vmem:[%s9] sm:$0x1]
    %v573 = vsel %vm74, %v569, 0.0
    %574 = vadd.xlane.f32.xlu0 %v573
    %v575 = vpop.xlane.xlu0 %574
    %v576 = vsel %vm74, %v570, 0.0
    %577 = vadd.xlane.f32.xlu0 %v576
    %v578 = vpop.xlane.xlu0 %577
    %v579 = vmul.f32 %v575, %v87
    %v580 = vmul.f32 %v578, %v87
    %v581 = vsub.f32 %v569, %v579
    %v582 = vsub.f32 %v570, %v580
    %v583 = vmul.f32 %v581, %v581
    %v584 = vmul.f32 %v582, %v582
    %v585 = vsel %vm74, %v583, 0.0
    %586 = vadd.xlane.f32.xlu0 %v585
    %v587 = vpop.xlane.xlu0 %586
    %v588 = vsel %vm74, %v584, 0.0
    %589 = vadd.xlane.f32.xlu0 %v588
    %v590 = vpop.xlane.xlu0 %589
    %v591 = vmul.f32 %v587, %v87
    %v592 = vmul.f32 %v590, %v87
    %v593 = vadd.f32 %v591, 1e-12
    %v594 = vadd.f32 %v592, 1e-12
    %v595 = vrsqrt.pop %v593
    %v596 = vmul.f32 %v595, %v593
    %v597 = vmul.f32 %v596, %v595
    %v598 = vmul.f32 0.5, %v597
    %v599 = vsub.f32 1.5, %v598
    %v600 = vmul.f32 %v595, %v599
    %vm601 = vweird.f32 %v593
    %vm602 = vweird.f32 %v595
    %vm603 = vmor %vm601, %vm602
    %v604 = vsel %vm603, %v595, %v600
    %v605 = vrsqrt.pop %v594
    %v606 = vmul.f32 %v605, %v594
    %v607 = vmul.f32 %v606, %v605
    %v608 = vmul.f32 0.5, %v607
    %v609 = vsub.f32 1.5, %v608
    %v610 = vmul.f32 %v605, %v609
    %vm611 = vweird.f32 %v594
    %vm612 = vweird.f32 %v605
    %vm613 = vmor %vm611, %vm612
    %v614 = vsel %vm613, %v605, %v610
    %v615 = vmul.f32 %v581, %v604
    %v616 = vmul.f32 %v582, %v614
    %v618 = vperm.slane %v571, 0
    %v620 = vmul.f32 %v615, %v618
    %v621 = vmul.f32 %v616, %v618
    %v623 = vperm.slane %v572, 0
    %v625 = vadd.f32 %v620, %v623
    %v626 = vadd.f32 %v621, %v623
    %v627 = vpack.c.bf16 %v626, %v625
    %v628 = vld [vmem:[%s10] sm:$0xf]
    %v629 = vld [vmem:[%s10 + $0x4] sm:$0xf]
    %v630 = vld [vmem:[%s10 + $0x8] sm:$0xf]
    %v631 = vld [vmem:[%s10 + $0xc] sm:$0xf]
    %v632 = vld [vmem:[%s11] sm:$0x1]
    %v634 = vperm.slane %v632, 0
    %v640 = vunpack.c.l.b16 %v628
    %v641 = vunpack.c.l.b16 %v629
    %v642 = vunpack.c.l.b16 %v630
    %v643 = vunpack.c.l.b16 %v631
    %v644 = vpack.c.b16 %v641, %v640
    %v645 = vpack.c.b16 %v643, %v642
    %v649 = vsel %vm74, %v627, 0
    %651 = vmatpush.bf16.msra.mxu0 0
    %652 = vmatpush.bf16.msra.mxu0 0
    %653 = vmatpush.bf16.msra.mxu0 0
    %654 = vmatpush.bf16.msra.mxu0 0
    %655 = vmatpush.bf16.msra.mxu0 0
    %656 = vmatpush.bf16.msra.mxu0 0
    %657 = vmatpush.bf16.msra.mxu0 %v645
    %658 = vmatpush.bf16.msra.mxu0 %v644
    %659 = vmatmul.bf16.gmra.mxu0 %v649
    %v660 = vpop.f32.mrf.mxu0
    %v661 = vadd.f32 %v634, %v660
    %v662 = vpop.f32.mrf.mxu0
    %v663 = vadd.f32 %v634, %v662
    %664 = vdwg.mxu0
    %v665 = vmul.f32 %v661, %v661
    %v666 = vmul.f32 %v663, %v663
    %v667 = vmul.f32 %v661, %v665
    %v668 = vmul.f32 %v663, %v666
    %v669 = vmul.f32 %v667, 0.044715
    %v670 = vmul.f32 %v668, 0.044715
    %v671 = vadd.f32 %v661, %v669
    %v672 = vadd.f32 %v663, %v670
    %v673 = vmul.f32 %v671, 0.7978846
    %v674 = vmul.f32 %v672, 0.7978846
    %v675 = vtanh.pop %v673
    %v676 = vtanh.pop %v674
    %v677 = vadd.f32 %v675, 1.0
    %v678 = vadd.f32 %v676, 1.0
    %v679 = vmul.f32 %v677, 0.5
    %v680 = vmul.f32 %v678, 0.5
    %v681 = vmul.f32 %v661, %v679
    %v682 = vmul.f32 %v663, %v680
    %v683 = vpack.c.bf16 %v682, %v681
    %v684 = vld [vmem:[%s12] sm:$0xf]
    %v685 = vld [vmem:[%s12 + $0x4] sm:$0xf]
    %v686 = vld [vmem:[%s12 + $0x8] sm:$0xf]
    %v687 = vld [vmem:[%s12 + $0xc] sm:$0xf]
    %v688 = vld [vmem:[%s12 + $0x10] sm:$0xf]
    %v689 = vld [vmem:[%s12 + $0x14] sm:$0xf]
    %v690 = vld [vmem:[%s12 + $0x18] sm:$0xf]
    %v691 = vld [vmem:[%s12 + $0x1c] sm:$0xf]
    %v692 = vld [vmem:[%s13] sm:$0x1]
    %v694 = vperm.slane %v692, 0
    %v704 = vunpack.c.l.b16 %v684
    %v705 = vunpack.c.l.b16 %v685
    %v706 = vunpack.c.l.b16 %v686
    %v707 = vunpack.c.l.b16 %v687
    %v708 = vunpack.c.l.b16 %v688
    %v709 = vunpack.c.l.b16 %v689
    %v710 = vunpack.c.l.b16 %v690
    %v711 = vunpack.c.l.b16 %v691
    %v712 = vpack.c.b16 %v705, %v704
    %v713 = vpack.c.b16 %v707, %v706
    %v714 = vpack.c.b16 %v709, %v708
    %v715 = vpack.c.b16 %v711, %v710
    %vm720 = vcmask 523264
    %v722 = vsel %vm720, %v683, 0
    %724 = vmatpush.bf16.msra.mxu0 0
    %725 = vmatpush.bf16.msra.mxu0 0
    %726 = vmatpush.bf16.msra.mxu0 0
    %727 = vmatpush.bf16.msra.mxu0 0
    %728 = vmatpush.bf16.msra.mxu0 %v715
    %729 = vmatpush.bf16.msra.mxu0 %v714
    %730 = vmatpush.bf16.msra.mxu0 %v713
    %731 = vmatpush.bf16.msra.mxu0 %v712
    %732 = vmatmul.bf16.gmra.mxu0 %v722
    %v733 = vpop.f32.mrf.mxu0
    %v734 = vadd.f32 %v694, %v733
    %v735 = vpop.f32.mrf.mxu0
    %v736 = vadd.f32 %v694, %v735
    %737 = vdwg.mxu0
    %v738 = vadd.f32 %v734, %v625
    %v739 = vadd.f32 %v736, %v626
    %v740 = vld [vmem:[%s14] sm:$0x1]
    %v741 = vld [vmem:[%s15] sm:$0x1]
    %v742 = vsel %vm74, %v738, 0.0
    %743 = vadd.xlane.f32.xlu0 %v742
    %v744 = vpop.xlane.xlu0 %743
    %v745 = vsel %vm74, %v739, 0.0
    %746 = vadd.xlane.f32.xlu0 %v745
    %v747 = vpop.xlane.xlu0 %746
    %v748 = vmul.f32 %v744, %v87
    %v749 = vmul.f32 %v747, %v87
    %v750 = vsub.f32 %v738, %v748
    %v751 = vsub.f32 %v739, %v749
    %v752 = vmul.f32 %v750, %v750
    %v753 = vmul.f32 %v751, %v751
    %v754 = vsel %vm74, %v752, 0.0
    %755 = vadd.xlane.f32.xlu0 %v754
    %v756 = vpop.xlane.xlu0 %755
    %v757 = vsel %vm74, %v753, 0.0
    %758 = vadd.xlane.f32.xlu0 %v757
    %v759 = vpop.xlane.xlu0 %758
    %v760 = vmul.f32 %v756, %v87
    %v761 = vmul.f32 %v759, %v87
    %v762 = vadd.f32 %v760, 1e-12
    %v763 = vadd.f32 %v761, 1e-12
    %v764 = vrsqrt.pop %v762
    %v765 = vmul.f32 %v764, %v762
    %v766 = vmul.f32 %v765, %v764
    %v767 = vmul.f32 0.5, %v766
    %v768 = vsub.f32 1.5, %v767
    %v769 = vmul.f32 %v764, %v768
    %vm770 = vweird.f32 %v762
    %vm771 = vweird.f32 %v764
    %vm772 = vmor %vm770, %vm771
    %v773 = vsel %vm772, %v764, %v769
    %v774 = vrsqrt.pop %v763
    %v775 = vmul.f32 %v774, %v763
    %v776 = vmul.f32 %v775, %v774
    %v777 = vmul.f32 0.5, %v776
    %v778 = vsub.f32 1.5, %v777
    %v779 = vmul.f32 %v774, %v778
    %vm780 = vweird.f32 %v763
    %vm781 = vweird.f32 %v774
    %vm782 = vmor %vm780, %vm781
    %v783 = vsel %vm782, %v774, %v779
    %v784 = vmul.f32 %v750, %v773
    %v785 = vmul.f32 %v751, %v783
    %v787 = vperm.slane %v740, 0
    %v789 = vmul.f32 %v784, %v787
    %v790 = vmul.f32 %v785, %v787
    %v792 = vperm.slane %v741, 0
    %v794 = vadd.f32 %v789, %v792
    %v795 = vadd.f32 %v790, %v792
    %v796 = vpack.c.bf16 %v795, %v794
    %s797 = scalar_lea.vmem %s4, 16
    %v798 = vld [vmem:[%s797] sm:$0xf]
    %v799 = vld [vmem:[%s797 + $0x4] sm:$0xf]
    %v800 = vld [vmem:[%s797 + $0x8] sm:$0xf]
    %v801 = vld [vmem:[%s797 + $0xc] sm:$0xf]
    %s802 = scalar_lea.vmem %s5, 1
    %v803 = vld [vmem:[%s802] sm:$0x1]
    %v805 = vperm.slane %v803, 0
    %v811 = vunpack.c.l.b16 %v798
    %v812 = vunpack.c.l.b16 %v799
    %v813 = vunpack.c.l.b16 %v800
    %v814 = vunpack.c.l.b16 %v801
    %v815 = vpack.c.b16 %v812, %v811
    %v816 = vpack.c.b16 %v814, %v813
    %v820 = vsel %vm74, %v796, 0
    %822 = vmatpush.bf16.msra.mxu0 0
    %823 = vmatpush.bf16.msra.mxu0 0
    %824 = vmatpush.bf16.msra.mxu0 0
    %825 = vmatpush.bf16.msra.mxu0 0
    %826 = vmatpush.bf16.msra.mxu0 0
    %827 = vmatpush.bf16.msra.mxu0 0
    %828 = vmatpush.bf16.msra.mxu0 %v816
    %829 = vmatpush.bf16.msra.mxu0 %v815
    %830 = vmatmul.bf16.gmra.mxu0 %v820
    %v831 = vpop.f32.mrf.mxu0
    %v832 = vadd.f32 %v805, %v831
    %v833 = vpop.f32.mrf.mxu0
    %v834 = vadd.f32 %v805, %v833
    %835 = vdwg.mxu0
    %v836 = vpack.c.bf16 %v834, %v832
    %838 = vrot.lane.b32.xlu0 %v836, 96
    %v839 = vpop.permute.xlu0 %838
    %v841 = vsel %vm218, %v836, 0
    %v844 = vsel %vm218, %v839, 0
    %846 = vmatpush.bf16.xpose.msra.mxu0 0
    %847 = vmatpush.bf16.xpose.msra.mxu0 0
    %848 = vmatpush.bf16.xpose.msra.mxu0 0
    %849 = vmatpush.bf16.xpose.msra.mxu0 0
    %850 = vmatpush.bf16.xpose.msra.mxu0 0
    %851 = vmatpush.bf16.xpose.msra.mxu0 0
    %852 = vmatpush.bf16.xpose.msra.mxu0 0
    %853 = vmatpush.bf16.xpose.msra.mxu0 %v844
    %854 = vmatmul.bf16.gmra.mxu0 %v841
    %v855 = vpop.f32.mrf.mxu0
    %v856 = vadd.f32 0.0, %v855
    %v857 = vpop.f32.mrf.mxu0
    %v858 = vadd.f32 0.0, %v857
    %859 = vdwg.mxu0
    %v860 = vmul.f32 %v856, 0.35355338
    %v861 = vmul.f32 %v858, 0.35355338
    %v862 = vadd.f32 %v860, %v174
    %v863 = vadd.f32 %v861, %v175
    %v864 = vsel %vm243, %v862, -inf
    %865 = vmax.xlane.f32.xlu0 %v864
    %v866 = vpop.xlane.xlu0 %865
    %v867 = vsel %vm243, %v863, -inf
    %868 = vmax.xlane.f32.xlu0 %v867
    %v869 = vpop.xlane.xlu0 %868
    %v870 = vsub.f32 %v862, %v866
    %v871 = vsub.f32 %v863, %v869
    %v872 = vmul.f32 %v870, 1.442695
    %v873 = vpow.pop %v872
    %v874 = vmul.f32 %v871, 1.442695
    %v875 = vpow.pop %v874
    %v876 = vsel %vm243, %v873, 0.0
    %877 = vadd.xlane.f32.xlu0 %v876
    %v878 = vpop.xlane.xlu0 %877
    %v879 = vsel %vm243, %v875, 0.0
    %880 = vadd.xlane.f32.xlu0 %v879
    %v881 = vpop.xlane.xlu0 %880
    %v882 = vrcp.pop %v878
    %v883 = vrcp.pop %v881
    %v884 = vmul.f32 %v873, %v882
    %v885 = vmul.f32 %v875, %v883
    %v886 = vpack.c.bf16 %v885, %v884
    %887 = vrot.lane.b32.xlu0 %v836, 64
    %v888 = vpop.permute.xlu0 %887
    %v891 = vsel %vm243, %v886, 0
    %893 = vmatpush.bf16.msra.mxu0 0
    %894 = vmatpush.bf16.msra.mxu0 0
    %895 = vmatpush.bf16.msra.mxu0 0
    %896 = vmatpush.bf16.msra.mxu0 0
    %897 = vmatpush.bf16.msra.mxu0 0
    %898 = vmatpush.bf16.msra.mxu0 0
    %899 = vmatpush.bf16.msra.mxu0 0
    %900 = vmatpush.bf16.msra.mxu0 %v888
    %901 = vmatmul.bf16.gmra.mxu0 %v891
    %v902 = vpop.f32.mrf.mxu0
    %v903 = vadd.f32 0.0, %v902
    %v904 = vpop.f32.mrf.mxu0
    %v905 = vadd.f32 0.0, %v904
    %906 = vdwg.mxu0
    %907 = vrot.lane.b32.xlu0 %v836, 120
    %v908 = vpop.permute.xlu0 %907
    %909 = vrot.lane.b32.xlu0 %v836, 88
    %v910 = vpop.permute.xlu0 %909
    %v912 = vsel %vm218, %v908, 0
    %v915 = vsel %vm218, %v910, 0
    %917 = vmatpush.bf16.xpose.msra.mxu0 0
    %918 = vmatpush.bf16.xpose.msra.mxu0 0
    %919 = vmatpush.bf16.xpose.msra.mxu0 0
    %920 = vmatpush.bf16.xpose.msra.mxu0 0
    %921 = vmatpush.bf16.xpose.msra.mxu0 0
    %922 = vmatpush.bf16.xpose.msra.mxu0 0
    %923 = vmatpush.bf16.xpose.msra.mxu0 0
    %924 = vmatpush.bf16.xpose.msra.mxu0 %v915
    %925 = vmatmul.bf16.gmra.mxu0 %v912
    %v926 = vpop.f32.mrf.mxu0
    %v927 = vadd.f32 0.0, %v926
    %v928 = vpop.f32.mrf.mxu0
    %v929 = vadd.f32 0.0, %v928
    %930 = vdwg.mxu0
    %v931 = vmul.f32 %v927, 0.35355338
    %v932 = vmul.f32 %v929, 0.35355338
    %v933 = vadd.f32 %v931, %v174
    %v934 = vadd.f32 %v932, %v175
    %v935 = vsel %vm243, %v933, -inf
    %936 = vmax.xlane.f32.xlu0 %v935
    %v937 = vpop.xlane.xlu0 %936
    %v938 = vsel %vm243, %v934, -inf
    %939 = vmax.xlane.f32.xlu0 %v938
    %v940 = vpop.xlane.xlu0 %939
    %v941 = vsub.f32 %v933, %v937
    %v942 = vsub.f32 %v934, %v940
    %v943 = vmul.f32 %v941, 1.442695
    %v944 = vpow.pop %v943
    %v945 = vmul.f32 %v942, 1.442695
    %v946 = vpow.pop %v945
    %v947 = vsel %vm243, %v944, 0.0
    %948 = vadd.xlane.f32.xlu0 %v947
    %v949 = vpop.xlane.xlu0 %948
    %v950 = vsel %vm243, %v946, 0.0
    %951 = vadd.xlane.f32.xlu0 %v950
    %v952 = vpop.xlane.xlu0 %951
    %v953 = vrcp.pop %v949
    %v954 = vrcp.pop %v952
    %v955 = vmul.f32 %v944, %v953
    %v956 = vmul.f32 %v946, %v954
    %v957 = vpack.c.bf16 %v956, %v955
    %958 = vrot.lane.b32.xlu0 %v836, 56
    %v959 = vpop.permute.xlu0 %958
    %v962 = vsel %vm243, %v957, 0
    %964 = vmatpush.bf16.msra.mxu0 0
    %965 = vmatpush.bf16.msra.mxu0 0
    %966 = vmatpush.bf16.msra.mxu0 0
    %967 = vmatpush.bf16.msra.mxu0 0
    %968 = vmatpush.bf16.msra.mxu0 0
    %969 = vmatpush.bf16.msra.mxu0 0
    %970 = vmatpush.bf16.msra.mxu0 0
    %971 = vmatpush.bf16.msra.mxu0 %v959
    %972 = vmatmul.bf16.gmra.mxu0 %v962
    %v973 = vpop.f32.mrf.mxu0
    %v974 = vadd.f32 0.0, %v973
    %v975 = vpop.f32.mrf.mxu0
    %v976 = vadd.f32 0.0, %v975
    %977 = vdwg.mxu0
    %978 = vrot.lane.b32.xlu0 %v836, 112
    %v979 = vpop.permute.xlu0 %978
    %980 = vrot.lane.b32.xlu0 %v836, 80
    %v981 = vpop.permute.xlu0 %980
    %v983 = vsel %vm218, %v979, 0
    %v986 = vsel %vm218, %v981, 0
    %988 = vmatpush.bf16.xpose.msra.mxu0 0
    %989 = vmatpush.bf16.xpose.msra.mxu0 0
    %990 = vmatpush.bf16.xpose.msra.mxu0 0
    %991 = vmatpush.bf16.xpose.msra.mxu0 0
    %992 = vmatpush.bf16.xpose.msra.mxu0 0
    %993 = vmatpush.bf16.xpose.msra.mxu0 0
    %994 = vmatpush.bf16.xpose.msra.mxu0 0
    %995 = vmatpush.bf16.xpose.msra.mxu0 %v986
    %996 = vmatmul.bf16.gmra.mxu0 %v983
    %v997 = vpop.f32.mrf.mxu0
    %v998 = vadd.f32 0.0, %v997
    %v999 = vpop.f32.mrf.mxu0
    %v1000 = vadd.f32 0.0, %v999
    %1001 = vdwg.mxu0
    %v1002 = vmul.f32 %v998, 0.35355338
    %v1003 = vmul.f32 %v1000, 0.35355338
    %v1004 = vadd.f32 %v1002, %v174
    %v1005 = vadd.f32 %v1003, %v175
    %v1006 = vsel %vm243, %v1004, -inf
    %1007 = vmax.xlane.f32.xlu0 %v1006
    %v1008 = vpop.xlane.xlu0 %1007
    %v1009 = vsel %vm243, %v1005, -inf
    %1010 = vmax.xlane.f32.xlu0 %v1009
    %v1011 = vpop.xlane.xlu0 %1010
    %v1012 = vsub.f32 %v1004, %v1008
    %v1013 = vsub.f32 %v1005, %v1011
    %v1014 = vmul.f32 %v1012, 1.442695
    %v1015 = vpow.pop %v1014
    %v1016 = vmul.f32 %v1013, 1.442695
    %v1017 = vpow.pop %v1016
    %v1018 = vsel %vm243, %v1015, 0.0
    %1019 = vadd.xlane.f32.xlu0 %v1018
    %v1020 = vpop.xlane.xlu0 %1019
    %v1021 = vsel %vm243, %v1017, 0.0
    %1022 = vadd.xlane.f32.xlu0 %v1021
    %v1023 = vpop.xlane.xlu0 %1022
    %v1024 = vrcp.pop %v1020
    %v1025 = vrcp.pop %v1023
    %v1026 = vmul.f32 %v1015, %v1024
    %v1027 = vmul.f32 %v1017, %v1025
    %v1028 = vpack.c.bf16 %v1027, %v1026
    %1029 = vrot.lane.b32.xlu0 %v836, 48
    %v1030 = vpop.permute.xlu0 %1029
    %v1033 = vsel %vm243, %v1028, 0
    %1035 = vmatpush.bf16.msra.mxu0 0
    %1036 = vmatpush.bf16.msra.mxu0 0
    %1037 = vmatpush.bf16.msra.mxu0 0
    %1038 = vmatpush.bf16.msra.mxu0 0
    %1039 = vmatpush.bf16.msra.mxu0 0
    %1040 = vmatpush.bf16.msra.mxu0 0
    %1041 = vmatpush.bf16.msra.mxu0 0
    %1042 = vmatpush.bf16.msra.mxu0 %v1030
    %1043 = vmatmul.bf16.gmra.mxu0 %v1033
    %v1044 = vpop.f32.mrf.mxu0
    %v1045 = vadd.f32 0.0, %v1044
    %v1046 = vpop.f32.mrf.mxu0
    %v1047 = vadd.f32 0.0, %v1046
    %1048 = vdwg.mxu0
    %1049 = vrot.lane.b32.xlu0 %v836, 104
    %v1050 = vpop.permute.xlu0 %1049
    %1051 = vrot.lane.b32.xlu0 %v836, 72
    %v1052 = vpop.permute.xlu0 %1051
    %v1054 = vsel %vm218, %v1050, 0
    %v1057 = vsel %vm218, %v1052, 0
    %1059 = vmatpush.bf16.xpose.msra.mxu0 0
    %1060 = vmatpush.bf16.xpose.msra.mxu0 0
    %1061 = vmatpush.bf16.xpose.msra.mxu0 0
    %1062 = vmatpush.bf16.xpose.msra.mxu0 0
    %1063 = vmatpush.bf16.xpose.msra.mxu0 0
    %1064 = vmatpush.bf16.xpose.msra.mxu0 0
    %1065 = vmatpush.bf16.xpose.msra.mxu0 0
    %1066 = vmatpush.bf16.xpose.msra.mxu0 %v1057
    %1067 = vmatmul.bf16.gmra.mxu0 %v1054
    %v1068 = vpop.f32.mrf.mxu0
    %v1069 = vadd.f32 0.0, %v1068
    %v1070 = vpop.f32.mrf.mxu0
    %v1071 = vadd.f32 0.0, %v1070
    %1072 = vdwg.mxu0
    %v1073 = vmul.f32 %v1069, 0.35355338
    %v1074 = vmul.f32 %v1071, 0.35355338
    %v1075 = vadd.f32 %v1073, %v174
    %v1076 = vadd.f32 %v1074, %v175
    %v1077 = vsel %vm243, %v1075, -inf
    %1078 = vmax.xlane.f32.xlu0 %v1077
    %v1079 = vpop.xlane.xlu0 %1078
    %v1080 = vsel %vm243, %v1076, -inf
    %1081 = vmax.xlane.f32.xlu0 %v1080
    %v1082 = vpop.xlane.xlu0 %1081
    %v1083 = vsub.f32 %v1075, %v1079
    %v1084 = vsub.f32 %v1076, %v1082
    %v1085 = vmul.f32 %v1083, 1.442695
    %v1086 = vpow.pop %v1085
    %v1087 = vmul.f32 %v1084, 1.442695
    %v1088 = vpow.pop %v1087
    %v1089 = vsel %vm243, %v1086, 0.0
    %1090 = vadd.xlane.f32.xlu0 %v1089
    %v1091 = vpop.xlane.xlu0 %1090
    %v1092 = vsel %vm243, %v1088, 0.0
    %1093 = vadd.xlane.f32.xlu0 %v1092
    %v1094 = vpop.xlane.xlu0 %1093
    %v1095 = vrcp.pop %v1091
    %v1096 = vrcp.pop %v1094
    %v1097 = vmul.f32 %v1086, %v1095
    %v1098 = vmul.f32 %v1088, %v1096
    %v1099 = vpack.c.bf16 %v1098, %v1097
    %1100 = vrot.lane.b32.xlu0 %v836, 40
    %v1101 = vpop.permute.xlu0 %1100
    %v1104 = vsel %vm243, %v1099, 0
    %1106 = vmatpush.bf16.msra.mxu0 0
    %1107 = vmatpush.bf16.msra.mxu0 0
    %1108 = vmatpush.bf16.msra.mxu0 0
    %1109 = vmatpush.bf16.msra.mxu0 0
    %1110 = vmatpush.bf16.msra.mxu0 0
    %1111 = vmatpush.bf16.msra.mxu0 0
    %1112 = vmatpush.bf16.msra.mxu0 0
    %1113 = vmatpush.bf16.msra.mxu0 %v1101
    %1114 = vmatmul.bf16.gmra.mxu0 %v1104
    %v1115 = vpop.f32.mrf.mxu0
    %v1116 = vadd.f32 0.0, %v1115
    %v1117 = vpop.f32.mrf.mxu0
    %v1118 = vadd.f32 0.0, %v1117
    %1119 = vdwg.mxu0
    %1122 = vrot.lane.b32.xlu0 %v974, 8
    %v1123 = vpop.permute.xlu0 %1122
    %1124 = vrot.lane.b32.xlu0 %v976, 8
    %v1125 = vpop.permute.xlu0 %1124
    %1130 = vrot.lane.b32.xlu0 %v1045, 16
    %v1131 = vpop.permute.xlu0 %1130
    %1132 = vrot.lane.b32.xlu0 %v1047, 16
    %v1133 = vpop.permute.xlu0 %1132
    %1138 = vrot.lane.b32.xlu0 %v1116, 24
    %v1139 = vpop.permute.xlu0 %1138
    %1140 = vrot.lane.b32.xlu0 %v1118, 24
    %v1141 = vpop.permute.xlu0 %1140
    %v1144 = vsel %vm218, %v903, %v1123
    %v1145 = vsel %vm218, %v905, %v1125
    %v1146 = vsel %vm243, %v1144, %v1131
    %v1147 = vsel %vm243, %v1145, %v1133
    %v1148 = vsel %vm528, %v1146, %v1139
    %v1149 = vsel %vm528, %v1147, %v1141
    %v1150 = vpack.c.bf16 %v1149, %v1148
    %s1151 = scalar_lea.vmem %s6, 16
    %v1152 = vld [vmem:[%s1151] sm:$0xf]
    %v1153 = vld [vmem:[%s1151 + $0x4] sm:$0xf]
    %v1154 = vld [vmem:[%s1151 + $0x8] sm:$0xf]
    %v1155 = vld [vmem:[%s1151 + $0xc] sm:$0xf]
    %s1156 = scalar_lea.vmem %s7, 1
    %v1157 = vld [vmem:[%s1156] sm:$0x1]
    %v1159 = vperm.slane %v1157, 0
    %v1165 = vunpack.c.l.b16 %v1152
    %v1166 = vunpack.c.l.b16 %v1153
    %v1167 = vunpack.c.l.b16 %v1154
    %v1168 = vunpack.c.l.b16 %v1155
    %v1169 = vpack.c.b16 %v1166, %v1165
    %v1170 = vpack.c.b16 %v1168, %v1167
    %v1174 = vsel %vm74, %v1150, 0
    %1176 = vmatpush.bf16.msra.mxu0 0
    %1177 = vmatpush.bf16.msra.mxu0 0
    %1178 = vmatpush.bf16.msra.mxu0 0
    %1179 = vmatpush.bf16.msra.mxu0 0
    %1180 = vmatpush.bf16.msra.mxu0 0
    %1181 = vmatpush.bf16.msra.mxu0 0
    %1182 = vmatpush.bf16.msra.mxu0 %v1170
    %1183 = vmatpush.bf16.msra.mxu0 %v1169
    %1184 = vmatmul.bf16.gmra.mxu0 %v1174
    %v1185 = vpop.f32.mrf.mxu0
    %v1186 = vadd.f32 %v1159, %v1185
    %v1187 = vpop.f32.mrf.mxu0
    %v1188 = vadd.f32 %v1159, %v1187
    %1189 = vdwg.mxu0
    %v1190 = vadd.f32 %v1186, %v794
    %v1191 = vadd.f32 %v1188, %v795
    %s1192 = scalar_lea.vmem %s8, 1
    %v1193 = vld [vmem:[%s1192] sm:$0x1]
    %s1194 = scalar_lea.vmem %s9, 1
    %v1195 = vld [vmem:[%s1194] sm:$0x1]
    %v1196 = vsel %vm74, %v1190, 0.0
    %1197 = vadd.xlane.f32.xlu0 %v1196
    %v1198 = vpop.xlane.xlu0 %1197
    %v1199 = vsel %vm74, %v1191, 0.0
    %1200 = vadd.xlane.f32.xlu0 %v1199
    %v1201 = vpop.xlane.xlu0 %1200
    %v1202 = vmul.f32 %v1198, %v87
    %v1203 = vmul.f32 %v1201, %v87
    %v1204 = vsub.f32 %v1190, %v1202
    %v1205 = vsub.f32 %v1191, %v1203
    %v1206 = vmul.f32 %v1204, %v1204
    %v1207 = vmul.f32 %v1205, %v1205
    %v1208 = vsel %vm74, %v1206, 0.0
    %1209 = vadd.xlane.f32.xlu0 %v1208
    %v1210 = vpop.xlane.xlu0 %1209
    %v1211 = vsel %vm74, %v1207, 0.0
    %1212 = vadd.xlane.f32.xlu0 %v1211
    %v1213 = vpop.xlane.xlu0 %1212
    %v1214 = vmul.f32 %v1210, %v87
    %v1215 = vmul.f32 %v1213, %v87
    %v1216 = vadd.f32 %v1214, 1e-12
    %v1217 = vadd.f32 %v1215, 1e-12
    %v1218 = vrsqrt.pop %v1216
    %v1219 = vmul.f32 %v1218, %v1216
    %v1220 = vmul.f32 %v1219, %v1218
    %v1221 = vmul.f32 0.5, %v1220
    %v1222 = vsub.f32 1.5, %v1221
    %v1223 = vmul.f32 %v1218, %v1222
    %vm1224 = vweird.f32 %v1216
    %vm1225 = vweird.f32 %v1218
    %vm1226 = vmor %vm1224, %vm1225
    %v1227 = vsel %vm1226, %v1218, %v1223
    %v1228 = vrsqrt.pop %v1217
    %v1229 = vmul.f32 %v1228, %v1217
    %v1230 = vmul.f32 %v1229, %v1228
    %v1231 = vmul.f32 0.5, %v1230
    %v1232 = vsub.f32 1.5, %v1231
    %v1233 = vmul.f32 %v1228, %v1232
    %vm1234 = vweird.f32 %v1217
    %vm1235 = vweird.f32 %v1228
    %vm1236 = vmor %vm1234, %vm1235
    %v1237 = vsel %vm1236, %v1228, %v1233
    %v1238 = vmul.f32 %v1204, %v1227
    %v1239 = vmul.f32 %v1205, %v1237
    %v1241 = vperm.slane %v1193, 0
    %v1243 = vmul.f32 %v1238, %v1241
    %v1244 = vmul.f32 %v1239, %v1241
    %v1246 = vperm.slane %v1195, 0
    %v1248 = vadd.f32 %v1243, %v1246
    %v1249 = vadd.f32 %v1244, %v1246
    %v1250 = vpack.c.bf16 %v1249, %v1248
    %s1251 = scalar_lea.vmem %s10, 16
    %v1252 = vld [vmem:[%s1251] sm:$0xf]
    %v1253 = vld [vmem:[%s1251 + $0x4] sm:$0xf]
    %v1254 = vld [vmem:[%s1251 + $0x8] sm:$0xf]
    %v1255 = vld [vmem:[%s1251 + $0xc] sm:$0xf]
    %s1256 = scalar_lea.vmem %s11, 1
    %v1257 = vld [vmem:[%s1256] sm:$0x1]
    %v1259 = vperm.slane %v1257, 0
    %v1265 = vunpack.c.l.b16 %v1252
    %v1266 = vunpack.c.l.b16 %v1253
    %v1267 = vunpack.c.l.b16 %v1254
    %v1268 = vunpack.c.l.b16 %v1255
    %v1269 = vpack.c.b16 %v1266, %v1265
    %v1270 = vpack.c.b16 %v1268, %v1267
    %v1274 = vsel %vm74, %v1250, 0
    %1276 = vmatpush.bf16.msra.mxu0 0
    %1277 = vmatpush.bf16.msra.mxu0 0
    %1278 = vmatpush.bf16.msra.mxu0 0
    %1279 = vmatpush.bf16.msra.mxu0 0
    %1280 = vmatpush.bf16.msra.mxu0 0
    %1281 = vmatpush.bf16.msra.mxu0 0
    %1282 = vmatpush.bf16.msra.mxu0 %v1270
    %1283 = vmatpush.bf16.msra.mxu0 %v1269
    %1284 = vmatmul.bf16.gmra.mxu0 %v1274
    %v1285 = vpop.f32.mrf.mxu0
    %v1286 = vadd.f32 %v1259, %v1285
    %v1287 = vpop.f32.mrf.mxu0
    %v1288 = vadd.f32 %v1259, %v1287
    %1289 = vdwg.mxu0
    %v1290 = vmul.f32 %v1286, %v1286
    %v1291 = vmul.f32 %v1288, %v1288
    %v1292 = vmul.f32 %v1286, %v1290
    %v1293 = vmul.f32 %v1288, %v1291
    %v1294 = vmul.f32 %v1292, 0.044715
    %v1295 = vmul.f32 %v1293, 0.044715
    %v1296 = vadd.f32 %v1286, %v1294
    %v1297 = vadd.f32 %v1288, %v1295
    %v1298 = vmul.f32 %v1296, 0.7978846
    %v1299 = vmul.f32 %v1297, 0.7978846
    %v1300 = vtanh.pop %v1298
    %v1301 = vtanh.pop %v1299
    %v1302 = vadd.f32 %v1300, 1.0
    %v1303 = vadd.f32 %v1301, 1.0
    %v1304 = vmul.f32 %v1302, 0.5
    %v1305 = vmul.f32 %v1303, 0.5
    %v1306 = vmul.f32 %v1286, %v1304
    %v1307 = vmul.f32 %v1288, %v1305
    %v1308 = vpack.c.bf16 %v1307, %v1306
    %s1309 = scalar_lea.vmem %s12, 32
    %v1310 = vld [vmem:[%s1309] sm:$0xf]
    %v1311 = vld [vmem:[%s1309 + $0x4] sm:$0xf]
    %v1312 = vld [vmem:[%s1309 + $0x8] sm:$0xf]
    %v1313 = vld [vmem:[%s1309 + $0xc] sm:$0xf]
    %v1314 = vld [vmem:[%s1309 + $0x10] sm:$0xf]
    %v1315 = vld [vmem:[%s1309 + $0x14] sm:$0xf]
    %v1316 = vld [vmem:[%s1309 + $0x18] sm:$0xf]
    %v1317 = vld [vmem:[%s1309 + $0x1c] sm:$0xf]
    %s1318 = scalar_lea.vmem %s13, 1
    %v1319 = vld [vmem:[%s1318] sm:$0x1]
    %v1321 = vperm.slane %v1319, 0
    %v1331 = vunpack.c.l.b16 %v1310
    %v1332 = vunpack.c.l.b16 %v1311
    %v1333 = vunpack.c.l.b16 %v1312
    %v1334 = vunpack.c.l.b16 %v1313
    %v1335 = vunpack.c.l.b16 %v1314
    %v1336 = vunpack.c.l.b16 %v1315
    %v1337 = vunpack.c.l.b16 %v1316
    %v1338 = vunpack.c.l.b16 %v1317
    %v1339 = vpack.c.b16 %v1332, %v1331
    %v1340 = vpack.c.b16 %v1334, %v1333
    %v1341 = vpack.c.b16 %v1336, %v1335
    %v1342 = vpack.c.b16 %v1338, %v1337
    %v1348 = vsel %vm720, %v1308, 0
    %1350 = vmatpush.bf16.msra.mxu0 0
    %1351 = vmatpush.bf16.msra.mxu0 0
    %1352 = vmatpush.bf16.msra.mxu0 0
    %1353 = vmatpush.bf16.msra.mxu0 0
    %1354 = vmatpush.bf16.msra.mxu0 %v1342
    %1355 = vmatpush.bf16.msra.mxu0 %v1341
    %1356 = vmatpush.bf16.msra.mxu0 %v1340
    %1357 = vmatpush.bf16.msra.mxu0 %v1339
    %1358 = vmatmul.bf16.gmra.mxu0 %v1348
    %v1359 = vpop.f32.mrf.mxu0
    %v1360 = vadd.f32 %v1321, %v1359
    %v1361 = vpop.f32.mrf.mxu0
    %v1362 = vadd.f32 %v1321, %v1361
    %1363 = vdwg.mxu0
    %v1364 = vadd.f32 %v1360, %v1248
    %v1365 = vadd.f32 %v1362, %v1249
    %s1366 = scalar_lea.vmem %s14, 1
    %v1367 = vld [vmem:[%s1366] sm:$0x1]
    %s1368 = scalar_lea.vmem %s15, 1
    %v1369 = vld [vmem:[%s1368] sm:$0x1]
    %v1370 = vsel %vm74, %v1364, 0.0
    %1371 = vadd.xlane.f32.xlu0 %v1370
    %v1372 = vpop.xlane.xlu0 %1371
    %v1373 = vsel %vm74, %v1365, 0.0
    %1374 = vadd.xlane.f32.xlu0 %v1373
    %v1375 = vpop.xlane.xlu0 %1374
    %v1376 = vmul.f32 %v1372, %v87
    %v1377 = vmul.f32 %v1375, %v87
    %v1378 = vsub.f32 %v1364, %v1376
    %v1379 = vsub.f32 %v1365, %v1377
    %v1380 = vmul.f32 %v1378, %v1378
    %v1381 = vmul.f32 %v1379, %v1379
    %v1382 = vsel %vm74, %v1380, 0.0
    %1383 = vadd.xlane.f32.xlu0 %v1382
    %v1384 = vpop.xlane.xlu0 %1383
    %v1385 = vsel %vm74, %v1381, 0.0
    %1386 = vadd.xlane.f32.xlu0 %v1385
    %v1387 = vpop.xlane.xlu0 %1386
    %v1388 = vmul.f32 %v1384, %v87
    %v1389 = vmul.f32 %v1387, %v87
    %v1390 = vadd.f32 %v1388, 1e-12
    %v1391 = vadd.f32 %v1389, 1e-12
    %v1392 = vrsqrt.pop %v1390
    %v1393 = vmul.f32 %v1392, %v1390
    %v1394 = vmul.f32 %v1393, %v1392
    %v1395 = vmul.f32 0.5, %v1394
    %v1396 = vsub.f32 1.5, %v1395
    %v1397 = vmul.f32 %v1392, %v1396
    %vm1398 = vweird.f32 %v1390
    %vm1399 = vweird.f32 %v1392
    %vm1400 = vmor %vm1398, %vm1399
    %v1401 = vsel %vm1400, %v1392, %v1397
    %v1402 = vrsqrt.pop %v1391
    %v1403 = vmul.f32 %v1402, %v1391
    %v1404 = vmul.f32 %v1403, %v1402
    %v1405 = vmul.f32 0.5, %v1404
    %v1406 = vsub.f32 1.5, %v1405
    %v1407 = vmul.f32 %v1402, %v1406
    %vm1408 = vweird.f32 %v1391
    %vm1409 = vweird.f32 %v1402
    %vm1410 = vmor %vm1408, %vm1409
    %v1411 = vsel %vm1410, %v1402, %v1407
    %v1412 = vmul.f32 %v1378, %v1401
    %v1413 = vmul.f32 %v1379, %v1411
    %v1415 = vperm.slane %v1367, 0
    %v1417 = vmul.f32 %v1412, %v1415
    %v1418 = vmul.f32 %v1413, %v1415
    %v1420 = vperm.slane %v1369, 0
    %v1422 = vadd.f32 %v1417, %v1420
    %v1423 = vadd.f32 %v1418, %v1420
    %v1425 = vrot.slane %v1423, 7
    %vm1427 = vcmask 1040384
    %v1428 = vsel %vm1427, %v1422, %v1425
    %v1429 = vpack.c.bf16 %v1428, %v1428
    %v1430 = vld [vmem:[%s16] sm:$0xf]
    %v1431 = vld [vmem:[%s16 + $0x4] sm:$0xf]
    %v1432 = vld [vmem:[%s16 + $0x8] sm:$0xf]
    %v1433 = vld [vmem:[%s16 + $0xc] sm:$0xf]
    %v1434 = vld [vmem:[%s17] sm:$0x1]
    %v1436 = vperm.slane %v1434, 0
    %v1442 = vunpack.c.l.b16 %v1430
    %v1443 = vunpack.c.l.b16 %v1431
    %v1444 = vunpack.c.l.b16 %v1432
    %v1445 = vunpack.c.l.b16 %v1433
    %v1446 = vpack.c.b16 %v1443, %v1442
    %v1447 = vpack.c.b16 %v1445, %v1444
    %v1451 = vsel %vm74, %v1429, 0
    %1453 = vmatpush.bf16.msra.mxu0 0
    %1454 = vmatpush.bf16.msra.mxu0 0
    %1455 = vmatpush.bf16.msra.mxu0 0
    %1456 = vmatpush.bf16.msra.mxu0 0
    %1457 = vmatpush.bf16.msra.mxu0 0
    %1458 = vmatpush.bf16.msra.mxu0 0
    %1459 = vmatpush.bf16.msra.mxu0 %v1447
    %1460 = vmatpush.bf16.msra.mxu0 %v1446
    %1461 = vmatmul.bf16.gmra.mxu0 %v1451
    %v1462 = vpop.f32.mrf.mxu0
    %v1463 = vadd.f32 %v1436, %v1462
    %v1464 = vpop.f32.mrf.mxu0
    %1465 = vdwg.mxu0
    %v1466 = vtanh.pop %v1463
    %vm1467 = vcmask 254976
    %1468 = vst.msk [vmem:[#allocation2] sm:$0x3] %vm1467, %v1466
    %v1469 = vpack.c.bf16 %v1423, %v1422
    %v1470 = vld [vmem:[%s18] sm:$0xf]
    %v1471 = vld [vmem:[%s18 + $0x4] sm:$0xf]
    %v1472 = vld [vmem:[%s18 + $0x8] sm:$0xf]
    %v1473 = vld [vmem:[%s18 + $0xc] sm:$0xf]
    %v1474 = vld [vmem:[%s19] sm:$0x1]
    %v1476 = vperm.slane %v1474, 0
    %v1482 = vunpack.c.l.b16 %v1470
    %v1483 = vunpack.c.l.b16 %v1471
    %v1484 = vunpack.c.l.b16 %v1472
    %v1485 = vunpack.c.l.b16 %v1473
    %v1486 = vpack.c.b16 %v1483, %v1482
    %v1487 = vpack.c.b16 %v1485, %v1484
    %v1491 = vsel %vm74, %v1469, 0
    %1493 = vmatpush.bf16.msra.mxu0 0
    %1494 = vmatpush.bf16.msra.mxu0 0
    %1495 = vmatpush.bf16.msra.mxu0 0
    %1496 = vmatpush.bf16.msra.mxu0 0
    %1497 = vmatpush.bf16.msra.mxu0 0
    %1498 = vmatpush.bf16.msra.mxu0 0
    %1499 = vmatpush.bf16.msra.mxu0 %v1487
    %1500 = vmatpush.bf16.msra.mxu0 %v1486
    %1501 = vmatmul.bf16.gmra.mxu0 %v1491
    %v1502 = vpop.f32.mrf.mxu0
    %v1503 = vadd.f32 %v1476, %v1502
    %v1504 = vpop.f32.mrf.mxu0
    %v1505 = vadd.f32 %v1476, %v1504
    %1506 = vdwg.mxu0
    %1507 = vst [vmem:[#allocation4] sm:$0xff] %v1503
    %1508 = vst [vmem:[#allocation4 + $0x8] sm:$0xff] %v1505
    // Predicated region
    $region82: #{model_forward.1} parent=1 // pred_check
      _
    $region83: #{model_forward.1} parent=1 // pred_check_branch
      %1510 = sbr.rel (0) target = $region85
    $region84: #{model_forward.1} parent=1 // pred_region
      %1512 = vsyncadd [#allocation3], 0
      %s1514 = sshll.u32 [#allocation2], 4
      %s1515 = int_to_ptr.vmem [resolvable:$true] %s1514
      %s1516 = sshll.u32 %s20, 4
      %s1517 = int_to_ptr.hbm [resolvable:$true] %s1516
      %1519 = dma.vmem_to_hbm [thread:$0]  %s1515, 32, %s1517, [#allocation3]
    $region85: #{model_forward.1} parent=1 // pred_fallthru
      _
    // Predicated region
    $region86: #{model_forward.1} parent=1 // pred_check
      _
    $region87: #{model_forward.1} parent=1 // pred_check_branch
      %1521 = sbr.rel (0) target = $region89
    $region88: #{model_forward.1} parent=1 // pred_region
      %1523 = vsyncadd [#allocation5], 0
      %s1524 = sshll.u32 [#allocation4], 4
      %s1525 = int_to_ptr.vmem [resolvable:$true] %s1524
      %s1526 = sshll.u32 %s21, 4
      %s1527 = int_to_ptr.hbm [resolvable:$true] %s1526
      %1532 = dma.vmem_to_hbm [thread:$0]  %s1525, 256, %s1527, [#allocation5], 128, 128, 8
    $region89: #{model_forward.1} parent=1 // pred_fallthru
      _
    // Predicated region
    $region90: #{model_forward.1} parent=1 // pred_check
      _
    $region91: #{model_forward.1} parent=1 // pred_check_branch
      %1534 = sbr.rel (0) target = $region93
    $region92: #{model_forward.1} parent=1 // pred_region
      %1536 = dma.done [#allocation3], 32
    $region93: #{model_forward.1} parent=1 // pred_fallthru
      _
    // Predicated region
    $region94: #{model_forward.1} parent=1 // pred_check
      _
    $region95: #{model_forward.1} parent=1 // pred_check_branch
      %1538 = sbr.rel (0) target = $region97
    $region96: #{model_forward.1} parent=1 // pred_region
      %1540 = dma.done [#allocation5], 256
    $region97: #{model_forward.1} parent=1 // pred_fallthru
      _
    %1541 = vsyncpa [#allocation3], 1
    %1542 = vsyncpa [#allocation5], 1

</llo_original>
